<compile_context>
chip_gen: v5e
topology: v5e:2x2
jax: 0.10.0
libtpu: 0.0.40
codegen_flags: <defaults>
</compile_context>

<pallas_src>
import math
import functools

import jax
import jax.numpy as jnp
from jax import lax
from jax.experimental import pallas as pl
from jax.experimental.pallas import tpu as pltpu


# ----------------------------------------------------------------------------
# In-kernel helpers (all f32 elementwise math; bf16 only at MXU boundaries)
# ----------------------------------------------------------------------------
def _layernorm(x, w, b, eps):
    mu = jnp.mean(x, axis=-1, keepdims=True)
    var = jnp.mean((x - mu) ** 2, axis=-1, keepdims=True)
    return (x - mu) * lax.rsqrt(var + eps) * w + b


def _mm(x_f32, w_lowp, b_f32):
    # bf16 operands into the MXU, f32 accumulation, f32 bias add.
    return jnp.dot(x_f32.astype(w_lowp.dtype), w_lowp,
                   preferred_element_type=jnp.float32) + b_f32


def _mha(q, k, v, *, num_heads, head_dim):
    """Head-batched attention. q:(S,H) k,v:(T,H) f32; scale already folded
    into the query projection weights. Returns (S, H) f32."""
    S = q.shape[0]
    T = k.shape[0]
    H = num_heads * head_dim
    cdt = jnp.bfloat16
    qh = q.reshape(S, num_heads, head_dim).transpose(1, 0, 2).astype(cdt)  # (NH,S,hd)
    kh = k.reshape(T, num_heads, head_dim).transpose(1, 0, 2).astype(cdt)  # (NH,T,hd)
    vh = v.reshape(T, num_heads, head_dim).transpose(1, 0, 2).astype(cdt)  # (NH,T,hd)
    # Batched over heads; contracts last dims => no explicit K transpose.
    s = jnp.einsum('hqd,hkd->hqk', qh, kh, preferred_element_type=jnp.float32)
    s = s - jnp.max(s, axis=-1, keepdims=True)
    e = jnp.exp(s)
    inv = pl.reciprocal(jnp.sum(e, axis=-1, keepdims=True), approx=True)
    p = (e * inv).astype(cdt)
    ctx = jnp.einsum('hqk,hkd->hqd', p, vh, preferred_element_type=jnp.float32)
    return ctx.transpose(1, 0, 2).reshape(S, H)


# ----------------------------------------------------------------------------
# Fused QtLayer kernel: one batch element per grid step, weights resident.
# ----------------------------------------------------------------------------
def qt_layer_kernel(hs_ref, enc_ref,
                    # self-attention block
                    ln1w_ref, ln1b_ref, wqkv1_ref, bqkv1_ref, wo1_ref, bo1_ref,
                    # cross-attention block
                    ln2w_ref, ln2b_ref, wq2_ref, bq2_ref, wkv2_ref, bkv2_ref,
                    wo2_ref, bo2_ref,
                    # feed-forward block
                    ln3w_ref, ln3b_ref, w1_ref, b1_ref, w2_ref, b2_ref,
                    out_ref, *, num_heads, head_dim, eps):
    H = num_heads * head_dim
    x = hs_ref[0]        # (S, H)   f32, pre-LN residual stream
    enc = enc_ref[0]     # (Senc, Hkv) f32

    # -------- 1. self-attention (K/V from hidden_states) --------
    xn = _layernorm(x, ln1w_ref[...], ln1b_ref[...], eps)
    qkv = _mm(xn, wqkv1_ref[...], bqkv1_ref[...])                 # (S, 3H)
    ctx1 = _mha(qkv[:, :H], qkv[:, H:2 * H], qkv[:, 2 * H:],
                num_heads=num_heads, head_dim=head_dim)
    x1 = x + _mm(ctx1, wo1_ref[...], bo1_ref[...])                # residual (f32)

    # -------- 2. cross-attention (K/V from encoder states, no LN on kv side) --------
    x1n = _layernorm(x1, ln2w_ref[...], ln2b_ref[...], eps)
    q2 = _mm(x1n, wq2_ref[...], bq2_ref[...])                     # (S, H)
    kv2 = _mm(enc, wkv2_ref[...], bkv2_ref[...])                  # (Senc, 2H)
    ctx2 = _mha(q2, kv2[:, :H], kv2[:, H:],
                num_heads=num_heads, head_dim=head_dim)
    x2 = x1 + _mm(ctx2, wo2_ref[...], bo2_ref[...])               # residual (f32)

    # -------- 3. feed-forward (erf-gelu, ESM formulation) --------
    # (intermediate dim is tiny here; for real sizes, K-tile I and accumulate)
    x2n = _layernorm(x2, ln3w_ref[...], ln3b_ref[...], eps)
    h = _mm(x2n, w1_ref[...], b1_ref[...])                        # (S, I)
    g = h * 0.5 * (1.0 + lax.erf(h * (1.0 / math.sqrt(2.0))))
    y = x2 + _mm(g, w2_ref[...], b2_ref[...])                     # (S, H)

    out_ref[0] = y.astype(out_ref.dtype)


# ----------------------------------------------------------------------------
# Wrappers
# ----------------------------------------------------------------------------
def _rep_spec(a):
    """Full-array block replicated across the batch grid (constant index_map)."""
    ndim = a.ndim

    def imap(b):
        return (0,) * ndim

    return pl.BlockSpec(a.shape, imap)


def prepare_qt_params(params, *, num_heads):
    """One-time host-side parameter prep (NOT in the per-call path):
    fuse QKV / KV weights, fold 1/sqrt(head_dim) into W_q & b_q, cast matmul
    weights to bf16 (biases and LayerNorm params stay f32)."""
    cdt = jnp.bfloat16
    lnw1, lnb1, wq1, bq1, wk1, bk1, wv1, bv1, wo1, bo1 = params["self_attn"]
    lnw2, lnb2, wq2, bq2, wk2, bk2, wv2, bv2, wo2, bo2 = params["cross_attn"]
    lnw3, lnb3, w1, b1, w2, b2 = params["ffn"]
    H = wq1.shape[0]
    scale = (H // num_heads) ** (-0.5)

    wqkv1 = jnp.concatenate([wq1 * scale, wk1, wv1], axis=1).astype(cdt)   # (H, 3H)
    bqkv1 = jnp.concatenate([bq1 * scale, bk1, bv1], axis=1)               # (1, 3H)
    wkv2 = jnp.concatenate([wk2, wv2], axis=1).astype(cdt)                 # (Hkv, 2H)
    bkv2 = jnp.concatenate([bk2, bv2], axis=1)                             # (1, 2H)

    return (lnw1, lnb1, wqkv1, bqkv1, wo1.astype(cdt), bo1,
            lnw2, lnb2, (wq2 * scale).astype(cdt), bq2 * scale, wkv2, bkv2,
            wo2.astype(cdt), bo2,
            lnw3, lnb3, w1.astype(cdt), b1, w2.astype(cdt), b2)


def qt_layer_forward(hidden_states, encoder_hidden_states, prep, *, num_heads, eps):
    B, S, H = hidden_states.shape
    _, Senc, Hkv = encoder_hidden_states.shape
    head_dim = H // num_heads

    kern = functools.partial(qt_layer_kernel, num_heads=num_heads,
                             head_dim=head_dim, eps=eps)
    # NOTE: at real sizes (H multiple of 128, large S) add an S-tiling grid
    # axis and pad/align the lane dimension; at this toy config the whole
    # layer for one batch element fits trivially in VMEM.
    return pl.pallas_call(
        kern,
        out_shape=jax.ShapeDtypeStruct((B, S, H), jnp.float32),
        grid=(B,),
        in_specs=[pl.BlockSpec((1, S, H), lambda b: (b, 0, 0)),
                  pl.BlockSpec((1, Senc, Hkv), lambda b: (b, 0, 0))]
                 + [_rep_spec(w) for w in prep],
        out_specs=pl.BlockSpec((1, S, H), lambda b: (b, 0, 0)),
        compiler_params=pltpu.CompilerParams(
            dimension_semantics=("parallel",),
            vmem_limit_bytes=32 * 1024 * 1024),
    )(hidden_states, encoder_hidden_states, *prep)


# ----------------------------------------------------------------------------
# Pure-JAX f32 reference (PyTorch-equivalent math) for a sanity check
# ----------------------------------------------------------------------------
def _ref_attention(hs, kv, params, num_heads, eps):
    lnw, lnb, wq, bq, wk, bk, wv, bv, wo, bo = params
    B, S, H = hs.shape
    hd = H // num_heads
    xn = _layernorm(hs, lnw, lnb, eps)
    q = xn @ wq + bq
    k = kv @ wk + bk
    v = kv @ wv + bv
    q = q.reshape(B, S, num_heads, hd).transpose(0, 2, 1, 3) * hd ** (-0.5)
    k = k.reshape(B, kv.shape[1], num_heads, hd).transpose(0, 2, 1, 3)
    v = v.reshape(B, kv.shape[1], num_heads, hd).transpose(0, 2, 1, 3)
    s = jnp.einsum("bhqd,bhkd->bhqk", q, k)
    p = jax.nn.softmax(s, axis=-1)
    ctx = jnp.einsum("bhqk,bhkd->bhqd", p, v).transpose(0, 2, 1, 3).reshape(B, S, H)
    return ctx @ wo + bo + hs


def _ref_ffn(x, params, eps):
    lnw, lnb, w1, b1, w2, b2 = params
    xn = _layernorm(x, lnw, lnb, eps)
    h = xn @ w1 + b1
    g = h * 0.5 * (1.0 + lax.erf(h / math.sqrt(2.0)))
    return g @ w2 + b2 + x


def qt_layer_reference(hs, enc, params, num_heads, eps):
    a = _ref_attention(hs, hs, params["self_attn"], num_heads, eps)
    a = _ref_attention(a, enc, params["cross_attn"], num_heads, eps)
    return _ref_ffn(a, params["ffn"], eps)


# ----------------------------------------------------------------------------
# Deterministic parameter init + driver
# ----------------------------------------------------------------------------
def _init_params(key, H, Hkv, I):
    keys = jax.random.split(key, 16)
    std = 0.02

    def lin(k, fin, fout):
        return (jax.random.normal(k, (fin, fout), jnp.float32) * std,
                jnp.zeros((1, fout), jnp.float32))

    wq1, bq1 = lin(keys[0], H, H)
    wk1, bk1 = lin(keys[1], H, H)
    wv1, bv1 = lin(keys[2], H, H)
    wo1, bo1 = lin(keys[3], H, H)
    wq2, bq2 = lin(keys[4], H, H)
    wk2, bk2 = lin(keys[5], Hkv, H)
    wv2, bv2 = lin(keys[6], Hkv, H)
    wo2, bo2 = lin(keys[7], H, H)
    w1, b1 = lin(keys[8], H, I)
    w2, b2 = lin(keys[9], I, H)

    ones = jnp.ones((1, H), jnp.float32)
    zeros = jnp.zeros((1, H), jnp.float32)
    return {
        "self_attn": (ones, zeros, wq1, bq1, wk1, bk1, wv1, bv1, wo1, bo1),
        "cross_attn": (ones, zeros, wq2, bq2, wk2, bk2, wv2, bv2, wo2, bo2),
        "ffn": (ones, zeros, w1, b1, w2, b2),
    }


if __name__ == "__main__":
    # small config: hidden=32, heads=4 (head_dim=8), intermediate=64,
    # qt_from_hidden_size (cross-attn K/V input dim)=48
    B, S, S_ENC = 2, 8, 8
    H, NH, I, HKV = 32, 4, 64, 48
    EPS = 1e-12

    key = jax.random.PRNGKey(0)
    k_param, k_hs, k_enc = jax.random.split(key, 3)
    params = _init_params(k_param, H, HKV, I)

    hidden_states = jax.random.normal(k_hs, (B, S, H), jnp.float32)
    encoder_hidden_states = jax.random.normal(k_enc, (B, S_ENC, HKV), jnp.float32)

    prep = prepare_qt_params(params, num_heads=NH)   # one-time host-side prep
    fwd = jax.jit(functools.partial(qt_layer_forward, num_heads=NH, eps=EPS))
    out = jax.block_until_ready(fwd(hidden_states, encoder_hidden_states, prep))

    ref = qt_layer_reference(hidden_states, encoder_hidden_states, params, NH, EPS)
    assert out.shape == (B, S, H)
    # Tolerance covers bf16 matmul operands + approx softmax reciprocal in the
    # kernel vs the pure-f32 reference (observed error is ~1e-3).
    assert jnp.allclose(out, ref, rtol=1e-2, atol=1e-2), "mismatch vs JAX reference"

    print("KERNEL_OK")
</pallas_src>

<mosaic_0001>
module attributes {stable_mosaic.version = 11 : i64} {
  func.func @qt_layer_kernel(%arg0: i32, %arg1: memref<1x8x32xf32, #tpu.memory_space<vmem>>, %arg2: memref<1x8x48xf32, #tpu.memory_space<vmem>>, %arg3: memref<1x32xf32, #tpu.memory_space<vmem>>, %arg4: memref<1x32xf32, #tpu.memory_space<vmem>>, %arg5: memref<32x96xbf16, #tpu.memory_space<vmem>>, %arg6: memref<1x96xf32, #tpu.memory_space<vmem>>, %arg7: memref<32x32xbf16, #tpu.memory_space<vmem>>, %arg8: memref<1x32xf32, #tpu.memory_space<vmem>>, %arg9: memref<1x32xf32, #tpu.memory_space<vmem>>, %arg10: memref<1x32xf32, #tpu.memory_space<vmem>>, %arg11: memref<32x32xbf16, #tpu.memory_space<vmem>>, %arg12: memref<1x32xf32, #tpu.memory_space<vmem>>, %arg13: memref<48x64xbf16, #tpu.memory_space<vmem>>, %arg14: memref<1x64xf32, #tpu.memory_space<vmem>>, %arg15: memref<32x32xbf16, #tpu.memory_space<vmem>>, %arg16: memref<1x32xf32, #tpu.memory_space<vmem>>, %arg17: memref<1x32xf32, #tpu.memory_space<vmem>>, %arg18: memref<1x32xf32, #tpu.memory_space<vmem>>, %arg19: memref<32x64xbf16, #tpu.memory_space<vmem>>, %arg20: memref<1x64xf32, #tpu.memory_space<vmem>>, %arg21: memref<64x32xbf16, #tpu.memory_space<vmem>>, %arg22: memref<1x32xf32, #tpu.memory_space<vmem>>, %arg23: memref<1x8x32xf32, #tpu.memory_space<vmem>>) attributes {dimension_semantics = [#tpu.dimension_semantics<parallel>], iteration_bounds = array<i64: 2>, scalar_prefetch = 0 : i64, scratch_operands = 0 : i64, tpu.core_type = #tpu.core_type<tc>, window_params = [{transform_indices = @transform_0, window_bounds = array<i64: 1, 8, 32>}, {transform_indices = @transform_1, window_bounds = array<i64: 1, 8, 48>}, {pipeline_mode = #tpu.pipeline_mode<synchronous>, transform_indices = @transform_2, window_bounds = array<i64: 1, 32>}, {pipeline_mode = #tpu.pipeline_mode<synchronous>, transform_indices = @transform_3, window_bounds = array<i64: 1, 32>}, {pipeline_mode = #tpu.pipeline_mode<synchronous>, transform_indices = @transform_4, window_bounds = array<i64: 32, 96>}, {pipeline_mode = #tpu.pipeline_mode<synchronous>, transform_indices = @transform_5, window_bounds = array<i64: 1, 96>}, {pipeline_mode = #tpu.pipeline_mode<synchronous>, transform_indices = @transform_6, window_bounds = array<i64: 32, 32>}, {pipeline_mode = #tpu.pipeline_mode<synchronous>, transform_indices = @transform_7, window_bounds = array<i64: 1, 32>}, {pipeline_mode = #tpu.pipeline_mode<synchronous>, transform_indices = @transform_8, window_bounds = array<i64: 1, 32>}, {pipeline_mode = #tpu.pipeline_mode<synchronous>, transform_indices = @transform_9, window_bounds = array<i64: 1, 32>}, {pipeline_mode = #tpu.pipeline_mode<synchronous>, transform_indices = @transform_10, window_bounds = array<i64: 32, 32>}, {pipeline_mode = #tpu.pipeline_mode<synchronous>, transform_indices = @transform_11, window_bounds = array<i64: 1, 32>}, {pipeline_mode = #tpu.pipeline_mode<synchronous>, transform_indices = @transform_12, window_bounds = array<i64: 48, 64>}, {pipeline_mode = #tpu.pipeline_mode<synchronous>, transform_indices = @transform_13, window_bounds = array<i64: 1, 64>}, {pipeline_mode = #tpu.pipeline_mode<synchronous>, transform_indices = @transform_14, window_bounds = array<i64: 32, 32>}, {pipeline_mode = #tpu.pipeline_mode<synchronous>, transform_indices = @transform_15, window_bounds = array<i64: 1, 32>}, {pipeline_mode = #tpu.pipeline_mode<synchronous>, transform_indices = @transform_16, window_bounds = array<i64: 1, 32>}, {pipeline_mode = #tpu.pipeline_mode<synchronous>, transform_indices = @transform_17, window_bounds = array<i64: 1, 32>}, {pipeline_mode = #tpu.pipeline_mode<synchronous>, transform_indices = @transform_18, window_bounds = array<i64: 32, 64>}, {pipeline_mode = #tpu.pipeline_mode<synchronous>, transform_indices = @transform_19, window_bounds = array<i64: 1, 64>}, {pipeline_mode = #tpu.pipeline_mode<synchronous>, transform_indices = @transform_20, window_bounds = array<i64: 64, 32>}, {pipeline_mode = #tpu.pipeline_mode<synchronous>, transform_indices = @transform_21, window_bounds = array<i64: 1, 32>}, {transform_indices = @transform_22, window_bounds = array<i64: 1, 8, 32>}]} {
    %c0 = arith.constant 0 : index
    %c0_0 = arith.constant 0 : index
    %c0_1 = arith.constant 0 : index
    %0 = vector.load %arg1[%c0, %c0_0, %c0_1] : memref<1x8x32xf32, #tpu.memory_space<vmem>>, vector<1x8x32xf32>
    %1 = vector.shape_cast %0 : vector<1x8x32xf32> to vector<8x32xf32>
    %c0_2 = arith.constant 0 : index
    %c0_3 = arith.constant 0 : index
    %c0_4 = arith.constant 0 : index
    %2 = vector.load %arg2[%c0_2, %c0_3, %c0_4] : memref<1x8x48xf32, #tpu.memory_space<vmem>>, vector<1x8x48xf32>
    %3 = vector.shape_cast %2 : vector<1x8x48xf32> to vector<8x48xf32>
    %c0_5 = arith.constant 0 : index
    %c0_6 = arith.constant 0 : index
    %4 = vector.load %arg3[%c0_5, %c0_6] : memref<1x32xf32, #tpu.memory_space<vmem>>, vector<1x32xf32>
    %c0_7 = arith.constant 0 : index
    %c0_8 = arith.constant 0 : index
    %5 = vector.load %arg4[%c0_7, %c0_8] : memref<1x32xf32, #tpu.memory_space<vmem>>, vector<1x32xf32>
    %cst = arith.constant dense<0.000000e+00> : vector<8xf32>
    %6 = vector.multi_reduction <add>, %1, %cst [1] : vector<8x32xf32> to vector<8xf32>
    %7 = vector.shape_cast %6 : vector<8xf32> to vector<8x1xf32>
    %cst_9 = arith.constant 3.200000e+01 : f32
    %8 = vector.broadcast %cst_9 : f32 to vector<8x1xf32>
    %9 = arith.divf %7, %8 : vector<8x1xf32>
    %10 = vector.broadcast %9 : vector<8x1xf32> to vector<8x32xf32>
    %11 = arith.subf %1, %10 : vector<8x32xf32>
    %12 = arith.mulf %11, %11 : vector<8x32xf32>
    %cst_10 = arith.constant dense<0.000000e+00> : vector<8xf32>
    %13 = vector.multi_reduction <add>, %12, %cst_10 [1] : vector<8x32xf32> to vector<8xf32>
    %14 = vector.shape_cast %13 : vector<8xf32> to vector<8x1xf32>
    %cst_11 = arith.constant 3.200000e+01 : f32
    %15 = vector.broadcast %cst_11 : f32 to vector<8x1xf32>
    %16 = arith.divf %14, %15 : vector<8x1xf32>
    %17 = vector.broadcast %9 : vector<8x1xf32> to vector<8x32xf32>
    %18 = arith.subf %1, %17 : vector<8x32xf32>
    %cst_12 = arith.constant 9.99999996E-13 : f32
    %19 = vector.broadcast %cst_12 : f32 to vector<8x1xf32>
    %20 = arith.addf %16, %19 : vector<8x1xf32>
    %21 = math.rsqrt %20 : vector<8x1xf32>
    %22 = vector.broadcast %21 : vector<8x1xf32> to vector<8x32xf32>
    %23 = arith.mulf %18, %22 : vector<8x32xf32>
    %24 = vector.broadcast %4 : vector<1x32xf32> to vector<8x32xf32>
    %25 = arith.mulf %23, %24 : vector<8x32xf32>
    %26 = vector.broadcast %5 : vector<1x32xf32> to vector<8x32xf32>
    %27 = arith.addf %25, %26 : vector<8x32xf32>
    %c0_13 = arith.constant 0 : index
    %c0_14 = arith.constant 0 : index
    %28 = vector.load %arg5[%c0_13, %c0_14] : memref<32x96xbf16, #tpu.memory_space<vmem>>, vector<32x96xbf16>
    %c0_15 = arith.constant 0 : index
    %c0_16 = arith.constant 0 : index
    %29 = vector.load %arg6[%c0_15, %c0_16] : memref<1x96xf32, #tpu.memory_space<vmem>>, vector<1x96xf32>
    %30 = arith.truncf %27 : vector<8x32xf32> to vector<8x32xbf16>
    %cst_17 = arith.constant dense<0.000000e+00> : vector<8x96xf32>
    %31 = tpu.matmul %30, %28, %cst_17 {dimension_numbers = #tpu.dot_dimension_numbers<[1], [0], [0], [1], [0, 0, 1, 1], [], []>} : vector<8x32xbf16>, vector<32x96xbf16>, vector<8x96xf32> -> vector<8x96xf32>
    %32 = vector.broadcast %29 : vector<1x96xf32> to vector<8x96xf32>
    %33 = arith.addf %31, %32 : vector<8x96xf32>
    %34 = vector.extract_strided_slice %33 {offsets = [0, 0], sizes = [8, 32], strides = [1, 1]} : vector<8x96xf32> to vector<8x32xf32>
    %35 = vector.extract_strided_slice %33 {offsets = [0, 32], sizes = [8, 32], strides = [1, 1]} : vector<8x96xf32> to vector<8x32xf32>
    %36 = vector.extract_strided_slice %33 {offsets = [0, 64], sizes = [8, 32], strides = [1, 1]} : vector<8x96xf32> to vector<8x32xf32>
    %37 = vector.shape_cast %34 : vector<8x32xf32> to vector<8x4x8xf32>
    %38 = tpu.transpose %37, [1, 0, 2] : vector<8x4x8xf32> -> vector<4x8x8xf32>
    %39 = arith.truncf %38 : vector<4x8x8xf32> to vector<4x8x8xbf16>
    %40 = vector.shape_cast %35 : vector<8x32xf32> to vector<8x4x8xf32>
    %41 = tpu.transpose %40, [1, 0, 2] : vector<8x4x8xf32> -> vector<4x8x8xf32>
    %42 = arith.truncf %41 : vector<4x8x8xf32> to vector<4x8x8xbf16>
    %43 = vector.shape_cast %36 : vector<8x32xf32> to vector<8x4x8xf32>
    %44 = tpu.transpose %43, [1, 0, 2] : vector<8x4x8xf32> -> vector<4x8x8xf32>
    %45 = arith.truncf %44 : vector<4x8x8xf32> to vector<4x8x8xbf16>
    "tpu.trace_start"() <{level = 10 : i32, message = "hqd,hkd->hqk"}> : () -> ()
    %cst_18 = arith.constant dense<0.000000e+00> : vector<4x8x8xf32>
    %46 = tpu.matmul %39, %42, %cst_18 {dimension_numbers = #tpu.dot_dimension_numbers<[2], [2], [1], [1], [0, 0, 0, 1, 1, 1], [0], [0]>} : vector<4x8x8xbf16>, vector<4x8x8xbf16>, vector<4x8x8xf32> -> vector<4x8x8xf32>
    "tpu.trace_stop"() : () -> ()
    %cst_19 = arith.constant dense<0xFF800000> : vector<4x8xf32>
    %47 = vector.multi_reduction <maximumf>, %46, %cst_19 [2] : vector<4x8x8xf32> to vector<4x8xf32>
    %48 = vector.shape_cast %47 : vector<4x8xf32> to vector<4x8x1xf32>
    %49 = vector.broadcast %48 : vector<4x8x1xf32> to vector<4x8x8xf32>
    %50 = arith.subf %46, %49 : vector<4x8x8xf32>
    %51 = math.exp %50 : vector<4x8x8xf32>
    %cst_20 = arith.constant dense<0.000000e+00> : vector<4x8xf32>
    %52 = vector.multi_reduction <add>, %51, %cst_20 [2] : vector<4x8x8xf32> to vector<4x8xf32>
    %53 = vector.shape_cast %52 : vector<4x8xf32> to vector<4x8x1xf32>
    %54 = tpu.reciprocal %53 {approx = true} : vector<4x8x1xf32> -> vector<4x8x1xf32>
    %55 = vector.broadcast %54 : vector<4x8x1xf32> to vector<4x8x8xf32>
    %56 = arith.mulf %51, %55 : vector<4x8x8xf32>
    %57 = arith.truncf %56 : vector<4x8x8xf32> to vector<4x8x8xbf16>
    "tpu.trace_start"() <{level = 10 : i32, message = "hqk,hkd->hqd"}> : () -> ()
    %cst_21 = arith.constant dense<0.000000e+00> : vector<4x8x8xf32>
    %58 = tpu.matmul %57, %45, %cst_21 {dimension_numbers = #tpu.dot_dimension_numbers<[2], [1], [1], [2], [0, 0, 0, 1, 1, 2], [0], [0]>} : vector<4x8x8xbf16>, vector<4x8x8xbf16>, vector<4x8x8xf32> -> vector<4x8x8xf32>
    "tpu.trace_stop"() : () -> ()
    %59 = tpu.transpose %58, [1, 0, 2] : vector<4x8x8xf32> -> vector<8x4x8xf32>
    %60 = vector.shape_cast %59 : vector<8x4x8xf32> to vector<8x32xf32>
    %c0_22 = arith.constant 0 : index
    %c0_23 = arith.constant 0 : index
    %61 = vector.load %arg7[%c0_22, %c0_23] : memref<32x32xbf16, #tpu.memory_space<vmem>>, vector<32x32xbf16>
    %c0_24 = arith.constant 0 : index
    %c0_25 = arith.constant 0 : index
    %62 = vector.load %arg8[%c0_24, %c0_25] : memref<1x32xf32, #tpu.memory_space<vmem>>, vector<1x32xf32>
    %63 = arith.truncf %60 : vector<8x32xf32> to vector<8x32xbf16>
    %cst_26 = arith.constant dense<0.000000e+00> : vector<8x32xf32>
    %64 = tpu.matmul %63, %61, %cst_26 {dimension_numbers = #tpu.dot_dimension_numbers<[1], [0], [0], [1], [0, 0, 1, 1], [], []>} : vector<8x32xbf16>, vector<32x32xbf16>, vector<8x32xf32> -> vector<8x32xf32>
    %65 = vector.broadcast %62 : vector<1x32xf32> to vector<8x32xf32>
    %66 = arith.addf %64, %65 : vector<8x32xf32>
    %67 = arith.addf %1, %66 : vector<8x32xf32>
    %c0_27 = arith.constant 0 : index
    %c0_28 = arith.constant 0 : index
    %68 = vector.load %arg9[%c0_27, %c0_28] : memref<1x32xf32, #tpu.memory_space<vmem>>, vector<1x32xf32>
    %c0_29 = arith.constant 0 : index
    %c0_30 = arith.constant 0 : index
    %69 = vector.load %arg10[%c0_29, %c0_30] : memref<1x32xf32, #tpu.memory_space<vmem>>, vector<1x32xf32>
    %cst_31 = arith.constant dense<0.000000e+00> : vector<8xf32>
    %70 = vector.multi_reduction <add>, %67, %cst_31 [1] : vector<8x32xf32> to vector<8xf32>
    %71 = vector.shape_cast %70 : vector<8xf32> to vector<8x1xf32>
    %cst_32 = arith.constant 3.200000e+01 : f32
    %72 = vector.broadcast %cst_32 : f32 to vector<8x1xf32>
    %73 = arith.divf %71, %72 : vector<8x1xf32>
    %74 = vector.broadcast %73 : vector<8x1xf32> to vector<8x32xf32>
    %75 = arith.subf %67, %74 : vector<8x32xf32>
    %76 = arith.mulf %75, %75 : vector<8x32xf32>
    %cst_33 = arith.constant dense<0.000000e+00> : vector<8xf32>
    %77 = vector.multi_reduction <add>, %76, %cst_33 [1] : vector<8x32xf32> to vector<8xf32>
    %78 = vector.shape_cast %77 : vector<8xf32> to vector<8x1xf32>
    %cst_34 = arith.constant 3.200000e+01 : f32
    %79 = vector.broadcast %cst_34 : f32 to vector<8x1xf32>
    %80 = arith.divf %78, %79 : vector<8x1xf32>
    %81 = vector.broadcast %73 : vector<8x1xf32> to vector<8x32xf32>
    %82 = arith.subf %67, %81 : vector<8x32xf32>
    %cst_35 = arith.constant 9.99999996E-13 : f32
    %83 = vector.broadcast %cst_35 : f32 to vector<8x1xf32>
    %84 = arith.addf %80, %83 : vector<8x1xf32>
    %85 = math.rsqrt %84 : vector<8x1xf32>
    %86 = vector.broadcast %85 : vector<8x1xf32> to vector<8x32xf32>
    %87 = arith.mulf %82, %86 : vector<8x32xf32>
    %88 = vector.broadcast %68 : vector<1x32xf32> to vector<8x32xf32>
    %89 = arith.mulf %87, %88 : vector<8x32xf32>
    %90 = vector.broadcast %69 : vector<1x32xf32> to vector<8x32xf32>
    %91 = arith.addf %89, %90 : vector<8x32xf32>
    %c0_36 = arith.constant 0 : index
    %c0_37 = arith.constant 0 : index
    %92 = vector.load %arg11[%c0_36, %c0_37] : memref<32x32xbf16, #tpu.memory_space<vmem>>, vector<32x32xbf16>
    %c0_38 = arith.constant 0 : index
    %c0_39 = arith.constant 0 : index
    %93 = vector.load %arg12[%c0_38, %c0_39] : memref<1x32xf32, #tpu.memory_space<vmem>>, vector<1x32xf32>
    %94 = arith.truncf %91 : vector<8x32xf32> to vector<8x32xbf16>
    %cst_40 = arith.constant dense<0.000000e+00> : vector<8x32xf32>
    %95 = tpu.matmul %94, %92, %cst_40 {dimension_numbers = #tpu.dot_dimension_numbers<[1], [0], [0], [1], [0, 0, 1, 1], [], []>} : vector<8x32xbf16>, vector<32x32xbf16>, vector<8x32xf32> -> vector<8x32xf32>
    %96 = vector.broadcast %93 : vector<1x32xf32> to vector<8x32xf32>
    %97 = arith.addf %95, %96 : vector<8x32xf32>
    %c0_41 = arith.constant 0 : index
    %c0_42 = arith.constant 0 : index
    %98 = vector.load %arg13[%c0_41, %c0_42] : memref<48x64xbf16, #tpu.memory_space<vmem>>, vector<48x64xbf16>
    %c0_43 = arith.constant 0 : index
    %c0_44 = arith.constant 0 : index
    %99 = vector.load %arg14[%c0_43, %c0_44] : memref<1x64xf32, #tpu.memory_space<vmem>>, vector<1x64xf32>
    %100 = arith.truncf %3 : vector<8x48xf32> to vector<8x48xbf16>
    %cst_45 = arith.constant dense<0.000000e+00> : vector<8x64xf32>
    %101 = tpu.matmul %100, %98, %cst_45 {dimension_numbers = #tpu.dot_dimension_numbers<[1], [0], [0], [1], [0, 0, 1, 1], [], []>} : vector<8x48xbf16>, vector<48x64xbf16>, vector<8x64xf32> -> vector<8x64xf32>
    %102 = vector.broadcast %99 : vector<1x64xf32> to vector<8x64xf32>
    %103 = arith.addf %101, %102 : vector<8x64xf32>
    %104 = vector.extract_strided_slice %103 {offsets = [0, 0], sizes = [8, 32], strides = [1, 1]} : vector<8x64xf32> to vector<8x32xf32>
    %105 = vector.extract_strided_slice %103 {offsets = [0, 32], sizes = [8, 32], strides = [1, 1]} : vector<8x64xf32> to vector<8x32xf32>
    %106 = vector.shape_cast %97 : vector<8x32xf32> to vector<8x4x8xf32>
    %107 = tpu.transpose %106, [1, 0, 2] : vector<8x4x8xf32> -> vector<4x8x8xf32>
    %108 = arith.truncf %107 : vector<4x8x8xf32> to vector<4x8x8xbf16>
    %109 = vector.shape_cast %104 : vector<8x32xf32> to vector<8x4x8xf32>
    %110 = tpu.transpose %109, [1, 0, 2] : vector<8x4x8xf32> -> vector<4x8x8xf32>
    %111 = arith.truncf %110 : vector<4x8x8xf32> to vector<4x8x8xbf16>
    %112 = vector.shape_cast %105 : vector<8x32xf32> to vector<8x4x8xf32>
    %113 = tpu.transpose %112, [1, 0, 2] : vector<8x4x8xf32> -> vector<4x8x8xf32>
    %114 = arith.truncf %113 : vector<4x8x8xf32> to vector<4x8x8xbf16>
    "tpu.trace_start"() <{level = 10 : i32, message = "hqd,hkd->hqk"}> : () -> ()
    %cst_46 = arith.constant dense<0.000000e+00> : vector<4x8x8xf32>
    %115 = tpu.matmul %108, %111, %cst_46 {dimension_numbers = #tpu.dot_dimension_numbers<[2], [2], [1], [1], [0, 0, 0, 1, 1, 1], [0], [0]>} : vector<4x8x8xbf16>, vector<4x8x8xbf16>, vector<4x8x8xf32> -> vector<4x8x8xf32>
    "tpu.trace_stop"() : () -> ()
    %cst_47 = arith.constant dense<0xFF800000> : vector<4x8xf32>
    %116 = vector.multi_reduction <maximumf>, %115, %cst_47 [2] : vector<4x8x8xf32> to vector<4x8xf32>
    %117 = vector.shape_cast %116 : vector<4x8xf32> to vector<4x8x1xf32>
    %118 = vector.broadcast %117 : vector<4x8x1xf32> to vector<4x8x8xf32>
    %119 = arith.subf %115, %118 : vector<4x8x8xf32>
    %120 = math.exp %119 : vector<4x8x8xf32>
    %cst_48 = arith.constant dense<0.000000e+00> : vector<4x8xf32>
    %121 = vector.multi_reduction <add>, %120, %cst_48 [2] : vector<4x8x8xf32> to vector<4x8xf32>
    %122 = vector.shape_cast %121 : vector<4x8xf32> to vector<4x8x1xf32>
    %123 = tpu.reciprocal %122 {approx = true} : vector<4x8x1xf32> -> vector<4x8x1xf32>
    %124 = vector.broadcast %123 : vector<4x8x1xf32> to vector<4x8x8xf32>
    %125 = arith.mulf %120, %124 : vector<4x8x8xf32>
    %126 = arith.truncf %125 : vector<4x8x8xf32> to vector<4x8x8xbf16>
    "tpu.trace_start"() <{level = 10 : i32, message = "hqk,hkd->hqd"}> : () -> ()
    %cst_49 = arith.constant dense<0.000000e+00> : vector<4x8x8xf32>
    %127 = tpu.matmul %126, %114, %cst_49 {dimension_numbers = #tpu.dot_dimension_numbers<[2], [1], [1], [2], [0, 0, 0, 1, 1, 2], [0], [0]>} : vector<4x8x8xbf16>, vector<4x8x8xbf16>, vector<4x8x8xf32> -> vector<4x8x8xf32>
    "tpu.trace_stop"() : () -> ()
    %128 = tpu.transpose %127, [1, 0, 2] : vector<4x8x8xf32> -> vector<8x4x8xf32>
    %129 = vector.shape_cast %128 : vector<8x4x8xf32> to vector<8x32xf32>
    %c0_50 = arith.constant 0 : index
    %c0_51 = arith.constant 0 : index
    %130 = vector.load %arg15[%c0_50, %c0_51] : memref<32x32xbf16, #tpu.memory_space<vmem>>, vector<32x32xbf16>
    %c0_52 = arith.constant 0 : index
    %c0_53 = arith.constant 0 : index
    %131 = vector.load %arg16[%c0_52, %c0_53] : memref<1x32xf32, #tpu.memory_space<vmem>>, vector<1x32xf32>
    %132 = arith.truncf %129 : vector<8x32xf32> to vector<8x32xbf16>
    %cst_54 = arith.constant dense<0.000000e+00> : vector<8x32xf32>
    %133 = tpu.matmul %132, %130, %cst_54 {dimension_numbers = #tpu.dot_dimension_numbers<[1], [0], [0], [1], [0, 0, 1, 1], [], []>} : vector<8x32xbf16>, vector<32x32xbf16>, vector<8x32xf32> -> vector<8x32xf32>
    %134 = vector.broadcast %131 : vector<1x32xf32> to vector<8x32xf32>
    %135 = arith.addf %133, %134 : vector<8x32xf32>
    %136 = arith.addf %67, %135 : vector<8x32xf32>
    %c0_55 = arith.constant 0 : index
    %c0_56 = arith.constant 0 : index
    %137 = vector.load %arg17[%c0_55, %c0_56] : memref<1x32xf32, #tpu.memory_space<vmem>>, vector<1x32xf32>
    %c0_57 = arith.constant 0 : index
    %c0_58 = arith.constant 0 : index
    %138 = vector.load %arg18[%c0_57, %c0_58] : memref<1x32xf32, #tpu.memory_space<vmem>>, vector<1x32xf32>
    %cst_59 = arith.constant dense<0.000000e+00> : vector<8xf32>
    %139 = vector.multi_reduction <add>, %136, %cst_59 [1] : vector<8x32xf32> to vector<8xf32>
    %140 = vector.shape_cast %139 : vector<8xf32> to vector<8x1xf32>
    %cst_60 = arith.constant 3.200000e+01 : f32
    %141 = vector.broadcast %cst_60 : f32 to vector<8x1xf32>
    %142 = arith.divf %140, %141 : vector<8x1xf32>
    %143 = vector.broadcast %142 : vector<8x1xf32> to vector<8x32xf32>
    %144 = arith.subf %136, %143 : vector<8x32xf32>
    %145 = arith.mulf %144, %144 : vector<8x32xf32>
    %cst_61 = arith.constant dense<0.000000e+00> : vector<8xf32>
    %146 = vector.multi_reduction <add>, %145, %cst_61 [1] : vector<8x32xf32> to vector<8xf32>
    %147 = vector.shape_cast %146 : vector<8xf32> to vector<8x1xf32>
    %cst_62 = arith.constant 3.200000e+01 : f32
    %148 = vector.broadcast %cst_62 : f32 to vector<8x1xf32>
    %149 = arith.divf %147, %148 : vector<8x1xf32>
    %150 = vector.broadcast %142 : vector<8x1xf32> to vector<8x32xf32>
    %151 = arith.subf %136, %150 : vector<8x32xf32>
    %cst_63 = arith.constant 9.99999996E-13 : f32
    %152 = vector.broadcast %cst_63 : f32 to vector<8x1xf32>
    %153 = arith.addf %149, %152 : vector<8x1xf32>
    %154 = math.rsqrt %153 : vector<8x1xf32>
    %155 = vector.broadcast %154 : vector<8x1xf32> to vector<8x32xf32>
    %156 = arith.mulf %151, %155 : vector<8x32xf32>
    %157 = vector.broadcast %137 : vector<1x32xf32> to vector<8x32xf32>
    %158 = arith.mulf %156, %157 : vector<8x32xf32>
    %159 = vector.broadcast %138 : vector<1x32xf32> to vector<8x32xf32>
    %160 = arith.addf %158, %159 : vector<8x32xf32>
    %c0_64 = arith.constant 0 : index
    %c0_65 = arith.constant 0 : index
    %161 = vector.load %arg19[%c0_64, %c0_65] : memref<32x64xbf16, #tpu.memory_space<vmem>>, vector<32x64xbf16>
    %c0_66 = arith.constant 0 : index
    %c0_67 = arith.constant 0 : index
    %162 = vector.load %arg20[%c0_66, %c0_67] : memref<1x64xf32, #tpu.memory_space<vmem>>, vector<1x64xf32>
    %163 = arith.truncf %160 : vector<8x32xf32> to vector<8x32xbf16>
    %cst_68 = arith.constant dense<0.000000e+00> : vector<8x64xf32>
    %164 = tpu.matmul %163, %161, %cst_68 {dimension_numbers = #tpu.dot_dimension_numbers<[1], [0], [0], [1], [0, 0, 1, 1], [], []>} : vector<8x32xbf16>, vector<32x64xbf16>, vector<8x64xf32> -> vector<8x64xf32>
    %165 = vector.broadcast %162 : vector<1x64xf32> to vector<8x64xf32>
    %166 = arith.addf %164, %165 : vector<8x64xf32>
    %cst_69 = arith.constant 5.000000e-01 : f32
    %167 = vector.broadcast %cst_69 : f32 to vector<8x64xf32>
    %168 = arith.mulf %166, %167 : vector<8x64xf32>
    %cst_70 = arith.constant 0.707106769 : f32
    %169 = vector.broadcast %cst_70 : f32 to vector<8x64xf32>
    %170 = arith.mulf %166, %169 : vector<8x64xf32>
    %171 = math.erf %170 : vector<8x64xf32>
    %cst_71 = arith.constant 1.000000e+00 : f32
    %172 = vector.broadcast %cst_71 : f32 to vector<8x64xf32>
    %173 = arith.addf %172, %171 : vector<8x64xf32>
    %174 = arith.mulf %168, %173 : vector<8x64xf32>
    %c0_72 = arith.constant 0 : index
    %c0_73 = arith.constant 0 : index
    %175 = vector.load %arg21[%c0_72, %c0_73] : memref<64x32xbf16, #tpu.memory_space<vmem>>, vector<64x32xbf16>
    %c0_74 = arith.constant 0 : index
    %c0_75 = arith.constant 0 : index
    %176 = vector.load %arg22[%c0_74, %c0_75] : memref<1x32xf32, #tpu.memory_space<vmem>>, vector<1x32xf32>
    %177 = arith.truncf %174 : vector<8x64xf32> to vector<8x64xbf16>
    %cst_76 = arith.constant dense<0.000000e+00> : vector<8x32xf32>
    %178 = tpu.matmul %177, %175, %cst_76 {dimension_numbers = #tpu.dot_dimension_numbers<[1], [0], [0], [1], [0, 0, 1, 1], [], []>} : vector<8x64xbf16>, vector<64x32xbf16>, vector<8x32xf32> -> vector<8x32xf32>
    %179 = vector.broadcast %176 : vector<1x32xf32> to vector<8x32xf32>
    %180 = arith.addf %178, %179 : vector<8x32xf32>
    %181 = arith.addf %136, %180 : vector<8x32xf32>
    %c0_77 = arith.constant 0 : index
    %c0_78 = arith.constant 0 : index
    %c0_79 = arith.constant 0 : index
    %182 = vector.load %arg23[%c0_77, %c0_78, %c0_79] : memref<1x8x32xf32, #tpu.memory_space<vmem>>, vector<1x8x32xf32>
    %183 = vector.shape_cast %182 : vector<1x8x32xf32> to vector<8x32xf32>
    %184 = vector.shape_cast %181 : vector<8x32xf32> to vector<1x8x32xf32>
    tpu.vector_store %arg23[%c0_77, %c0_78, %c0_79], %184 {strides = array<i32>} : memref<1x8x32xf32, #tpu.memory_space<vmem>>, vector<1x8x32xf32>,
    return
  }
  func.func @transform_0(%arg0: i32) -> (i32, i32, i32) {
    %c0_i32 = arith.constant 0 : i32
    %c0_i32_0 = arith.constant 0 : i32
    %c0_i32_1 = arith.constant 0 : i32
    return %arg0, %c0_i32, %c0_i32_0 : i32, i32, i32
  }
  func.func @transform_1(%arg0: i32) -> (i32, i32, i32) {
    %c0_i32 = arith.constant 0 : i32
    %c0_i32_0 = arith.constant 0 : i32
    %c0_i32_1 = arith.constant 0 : i32
    return %arg0, %c0_i32, %c0_i32_0 : i32, i32, i32
  }
  func.func @transform_2(%arg0: i32) -> (i32, i32) {
    %c0_i32 = arith.constant 0 : i32
    %c0_i32_0 = arith.constant 0 : i32
    %c0_i32_1 = arith.constant 0 : i32
    return %c0_i32, %c0_i32_0 : i32, i32
  }
  func.func @transform_3(%arg0: i32) -> (i32, i32) {
    %c0_i32 = arith.constant 0 : i32
    %c0_i32_0 = arith.constant 0 : i32
    %c0_i32_1 = arith.constant 0 : i32
    return %c0_i32, %c0_i32_0 : i32, i32
  }
  func.func @transform_4(%arg0: i32) -> (i32, i32) {
    %c0_i32 = arith.constant 0 : i32
    %c0_i32_0 = arith.constant 0 : i32
    %c0_i32_1 = arith.constant 0 : i32
    return %c0_i32, %c0_i32_0 : i32, i32
  }
  func.func @transform_5(%arg0: i32) -> (i32, i32) {
    %c0_i32 = arith.constant 0 : i32
    %c0_i32_0 = arith.constant 0 : i32
    %c0_i32_1 = arith.constant 0 : i32
    return %c0_i32, %c0_i32_0 : i32, i32
  }
  func.func @transform_6(%arg0: i32) -> (i32, i32) {
    %c0_i32 = arith.constant 0 : i32
    %c0_i32_0 = arith.constant 0 : i32
    %c0_i32_1 = arith.constant 0 : i32
    return %c0_i32, %c0_i32_0 : i32, i32
  }
  func.func @transform_7(%arg0: i32) -> (i32, i32) {
    %c0_i32 = arith.constant 0 : i32
    %c0_i32_0 = arith.constant 0 : i32
    %c0_i32_1 = arith.constant 0 : i32
    return %c0_i32, %c0_i32_0 : i32, i32
  }
  func.func @transform_8(%arg0: i32) -> (i32, i32) {
    %c0_i32 = arith.constant 0 : i32
    %c0_i32_0 = arith.constant 0 : i32
    %c0_i32_1 = arith.constant 0 : i32
    return %c0_i32, %c0_i32_0 : i32, i32
  }
  func.func @transform_9(%arg0: i32) -> (i32, i32) {
    %c0_i32 = arith.constant 0 : i32
    %c0_i32_0 = arith.constant 0 : i32
    %c0_i32_1 = arith.constant 0 : i32
    return %c0_i32, %c0_i32_0 : i32, i32
  }
  func.func @transform_10(%arg0: i32) -> (i32, i32) {
    %c0_i32 = arith.constant 0 : i32
    %c0_i32_0 = arith.constant 0 : i32
    %c0_i32_1 = arith.constant 0 : i32
    return %c0_i32, %c0_i32_0 : i32, i32
  }
  func.func @transform_11(%arg0: i32) -> (i32, i32) {
    %c0_i32 = arith.constant 0 : i32
    %c0_i32_0 = arith.constant 0 : i32
    %c0_i32_1 = arith.constant 0 : i32
    return %c0_i32, %c0_i32_0 : i32, i32
  }
  func.func @transform_12(%arg0: i32) -> (i32, i32) {
    %c0_i32 = arith.constant 0 : i32
    %c0_i32_0 = arith.constant 0 : i32
    %c0_i32_1 = arith.constant 0 : i32
    return %c0_i32, %c0_i32_0 : i32, i32
  }
  func.func @transform_13(%arg0: i32) -> (i32, i32) {
    %c0_i32 = arith.constant 0 : i32
    %c0_i32_0 = arith.constant 0 : i32
    %c0_i32_1 = arith.constant 0 : i32
    return %c0_i32, %c0_i32_0 : i32, i32
  }
  func.func @transform_14(%arg0: i32) -> (i32, i32) {
    %c0_i32 = arith.constant 0 : i32
    %c0_i32_0 = arith.constant 0 : i32
    %c0_i32_1 = arith.constant 0 : i32
    return %c0_i32, %c0_i32_0 : i32, i32
  }
  func.func @transform_15(%arg0: i32) -> (i32, i32) {
    %c0_i32 = arith.constant 0 : i32
    %c0_i32_0 = arith.constant 0 : i32
    %c0_i32_1 = arith.constant 0 : i32
    return %c0_i32, %c0_i32_0 : i32, i32
  }
  func.func @transform_16(%arg0: i32) -> (i32, i32) {
    %c0_i32 = arith.constant 0 : i32
    %c0_i32_0 = arith.constant 0 : i32
    %c0_i32_1 = arith.constant 0 : i32
    return %c0_i32, %c0_i32_0 : i32, i32
  }
  func.func @transform_17(%arg0: i32) -> (i32, i32) {
    %c0_i32 = arith.constant 0 : i32
    %c0_i32_0 = arith.constant 0 : i32
    %c0_i32_1 = arith.constant 0 : i32
    return %c0_i32, %c0_i32_0 : i32, i32
  }
  func.func @transform_18(%arg0: i32) -> (i32, i32) {
    %c0_i32 = arith.constant 0 : i32
    %c0_i32_0 = arith.constant 0 : i32
    %c0_i32_1 = arith.constant 0 : i32
    return %c0_i32, %c0_i32_0 : i32, i32
  }
  func.func @transform_19(%arg0: i32) -> (i32, i32) {
    %c0_i32 = arith.constant 0 : i32
    %c0_i32_0 = arith.constant 0 : i32
    %c0_i32_1 = arith.constant 0 : i32
    return %c0_i32, %c0_i32_0 : i32, i32
  }
  func.func @transform_20(%arg0: i32) -> (i32, i32) {
    %c0_i32 = arith.constant 0 : i32
    %c0_i32_0 = arith.constant 0 : i32
    %c0_i32_1 = arith.constant 0 : i32
    return %c0_i32, %c0_i32_0 : i32, i32
  }
  func.func @transform_21(%arg0: i32) -> (i32, i32) {
    %c0_i32 = arith.constant 0 : i32
    %c0_i32_0 = arith.constant 0 : i32
    %c0_i32_1 = arith.constant 0 : i32
    return %c0_i32, %c0_i32_0 : i32, i32
  }
  func.func @transform_22(%arg0: i32) -> (i32, i32, i32) {
    %c0_i32 = arith.constant 0 : i32
    %c0_i32_0 = arith.constant 0 : i32
    %c0_i32_1 = arith.constant 0 : i32
    return %arg0, %c0_i32, %c0_i32_0 : i32, i32, i32
  }
}

</mosaic_0001>

<llo_original>
// kernel: qt_layer_forward.1
$region0: #{qt_layer_forward.1}
  #allocation0 [shape = 'u32[]', space=smem, size = 0x4, offset = 0x4, fixed_abs, tag = 'smem constant byte address 0x4 - core index']
  #allocation1 [shape = 'u32[72,128]{1,0:T(1,128)}', space=vmem, size = 0x9000, scoped, tag = 'internal scratch']
  %s0 = inlined_call_operand.vmem [shape: f32[2,8,32], index: 0, kind: input, shape index: {}]
  %s1 = inlined_call_operand.hbm [shape: f32[2,8,48], index: 1, kind: input, shape index: {}]
  %s2 = inlined_call_operand.vmem [shape: f32[1,32], index: 2, kind: input, shape index: {}]
  %s3 = inlined_call_operand.vmem [shape: f32[1,32], index: 3, kind: input, shape index: {}]
  %s4 = inlined_call_operand.hbm [shape: bf16[32,96], index: 4, kind: input, shape index: {}]
  %s5 = inlined_call_operand.vmem [shape: f32[1,96], index: 5, kind: input, shape index: {}]
  %s6 = inlined_call_operand.hbm [shape: bf16[32,32], index: 6, kind: input, shape index: {}]
  %s7 = inlined_call_operand.vmem [shape: f32[1,32], index: 7, kind: input, shape index: {}]
  %s8 = inlined_call_operand.vmem [shape: f32[1,32], index: 8, kind: input, shape index: {}]
  %s9 = inlined_call_operand.vmem [shape: f32[1,32], index: 9, kind: input, shape index: {}]
  %s10 = inlined_call_operand.hbm [shape: bf16[32,32], index: 10, kind: input, shape index: {}]
  %s11 = inlined_call_operand.vmem [shape: f32[1,32], index: 11, kind: input, shape index: {}]
  %s12 = inlined_call_operand.vmem [shape: bf16[48,64], index: 12, kind: input, shape index: {}]
  %s13 = inlined_call_operand.vmem [shape: f32[1,64], index: 13, kind: input, shape index: {}]
  %s14 = inlined_call_operand.hbm [shape: bf16[32,32], index: 14, kind: input, shape index: {}]
  %s15 = inlined_call_operand.vmem [shape: f32[1,32], index: 15, kind: input, shape index: {}]
  %s16 = inlined_call_operand.vmem [shape: f32[1,32], index: 16, kind: input, shape index: {}]
  %s17 = inlined_call_operand.vmem [shape: f32[1,32], index: 17, kind: input, shape index: {}]
  %s18 = inlined_call_operand.hbm [shape: bf16[32,64], index: 18, kind: input, shape index: {}]
  %s19 = inlined_call_operand.hbm [shape: f32[1,64], index: 19, kind: input, shape index: {}]
  %s20 = inlined_call_operand.vmem [shape: bf16[64,32], index: 20, kind: input, shape index: {}]
  %s21 = inlined_call_operand.vmem [shape: f32[1,32], index: 21, kind: input, shape index: {}]
  %s22 = inlined_call_operand.hbm [shape: f32[2,8,32], index: 22, kind: output, shape index: {}]
  %s23 = sld [smem:[#allocation0]]
  $region149: #{qt_layer_forward.1} parent=0
    _
  %s25 = ssub.s32 1, %s23
  %s26 = scalar_select 0, %s25, %s23
  $region1: #{qt_layer_forward.1} parent=0
    #allocation2 [shape = 'u8[8192]{0}', space=vmem, size = 0x2000, scoped, tag = 'input window, operand 1']
    #allocation3 [shape = 's32[2]{0}', space=sflag, size = 0x8, scoped, tag = 'scoped memory for qt_layer_forward.1']
    #allocation4 [shape = 's32[2]{0}', space=sflag, size = 0x8, scoped, tag = 'scoped memory for qt_layer_forward.1']
    #allocation5 [shape = 'u8[8192]{0}', space=vmem, size = 0x2000, scoped, tag = 'input window, operand 4, single buffered']
    #allocation6 [shape = 's32[1]{0}', space=sflag, size = 0x4, scoped, tag = 'scoped memory for qt_layer_forward.1']
    #allocation7 [shape = 'u8[8192]{0}', space=vmem, size = 0x2000, scoped, tag = 'input window, operand 6, single buffered']
    #allocation8 [shape = 'u8[8192]{0}', space=vmem, size = 0x2000, scoped, tag = 'input window, operand 10, single buffered']
    #allocation9 [shape = 's32[1]{0}', space=sflag, size = 0x4, scoped, tag = 'scoped memory for qt_layer_forward.1']
    #allocation10 [shape = 'u8[8192]{0}', space=vmem, size = 0x2000, scoped, tag = 'input window, operand 14, single buffered']
    #allocation11 [shape = 'u8[8192]{0}', space=vmem, size = 0x2000, scoped, tag = 'input window, operand 18, single buffered']
    #allocation12 [shape = 's32[1]{0}', space=sflag, size = 0x4, scoped, tag = 'scoped memory for qt_layer_forward.1']
    #allocation13 [shape = 'u8[512]{0}', space=vmem, size = 0x400, scoped, tag = 'input window, operand 19, single buffered']
    #allocation14 [shape = 'u8[8192]{0}', space=vmem, size = 0x2000, scoped, tag = 'output window, operand 0']
    %27 = vsyncpa [#allocation3], 0
    %s28 = scalar_lea.sflag [#allocation3], 1
    %29 = vsyncpa %s28, 0
    %30 = vsyncpa [#allocation6], 0
    %31 = vsyncpa [#allocation9], 0
    %32 = vsyncpa [#allocation12], 0
    %33 = vsyncpa [#allocation4], 0
    %s34 = scalar_lea.sflag [#allocation4], 1
    %35 = vsyncpa %s34, 0
    loop: start=0, step=1, limit=4
    $region2: #{qt_layer_forward.1} parent=1 // loop_pre_header
      _
    $region3: #{qt_layer_forward.1} parent=1 // loop_header
      %s37 = sphi 0, %s41
      %p38 = scmp.ge.s32.totalorder %s37, 4
      %s47 = sphi 0, %s49
      %s50 = sphi 0, %s47
      %s51 = sphi 0, %s50
      %s67 = sphi 0, %s51
      %s73 = sphi 0, %s75
      %s76 = sphi 0, %s73
      %s77 = sphi 0, %s76
      %s93 = sphi 0, %s77
      %s97 = sphi 0, %s97
      %s99 = sphi 0, %s97
      %s100 = sphi 0, %s99
      %s114 = sphi 0, %s100
      %s118 = sphi 0, %s118
      %s120 = sphi 0, %s118
      %s121 = sphi 0, %s120
      %s135 = sphi 0, %s121
      %s139 = sphi 0, %s139
      %s141 = sphi 0, %s139
      %s142 = sphi 0, %s141
      %s156 = sphi 0, %s142
      %s160 = sphi 0, %s160
      %s162 = sphi 0, %s160
      %s163 = sphi 0, %s162
      %s177 = sphi 0, %s163
      %s181 = sphi 0, %s181
      %s183 = sphi 0, %s181
      %s184 = sphi 0, %s183
      %s198 = sphi 0, %s184
      %s202 = sphi 0, %s202
      %s204 = sphi 0, %s202
      %s205 = sphi 0, %s204
      %s219 = sphi 0, %s205
      %s223 = sphi 0, %s223
      %s225 = sphi 0, %s223
      %s226 = sphi 0, %s225
      %s240 = sphi 0, %s226
      %s244 = sphi 0, %s244
      %s246 = sphi 0, %s244
      %s247 = sphi 0, %s246
      %s261 = sphi 0, %s247
      %s265 = sphi 0, %s265
      %s267 = sphi 0, %s265
      %s268 = sphi 0, %s267
      %s282 = sphi 0, %s268
      %s286 = sphi 0, %s286
      %s288 = sphi 0, %s286
      %s289 = sphi 0, %s288
      %s303 = sphi 0, %s289
      %s307 = sphi 0, %s307
      %s309 = sphi 0, %s307
      %s310 = sphi 0, %s309
      %s324 = sphi 0, %s310
      %s328 = sphi 0, %s328
      %s330 = sphi 0, %s328
      %s331 = sphi 0, %s330
      %s345 = sphi 0, %s331
      %s349 = sphi 0, %s349
      %s351 = sphi 0, %s349
      %s352 = sphi 0, %s351
      %s366 = sphi 0, %s352
      %s370 = sphi 0, %s370
      %s372 = sphi 0, %s370
      %s373 = sphi 0, %s372
      %s387 = sphi 0, %s373
      %s391 = sphi 0, %s391
      %s393 = sphi 0, %s391
      %s394 = sphi 0, %s393
      %s408 = sphi 0, %s394
      %s412 = sphi 0, %s412
      %s414 = sphi 0, %s412
      %s415 = sphi 0, %s414
      %s429 = sphi 0, %s415
      %s433 = sphi 0, %s433
      %s435 = sphi 0, %s433
      %s436 = sphi 0, %s435
      %s450 = sphi 0, %s436
      %s454 = sphi 0, %s454
      %s456 = sphi 0, %s454
      %s457 = sphi 0, %s456
      %s471 = sphi 0, %s457
      %s475 = sphi 0, %s475
      %s477 = sphi 0, %s475
      %s478 = sphi 0, %s477
      %s492 = sphi 0, %s478
      %s496 = sphi 0, %s496
      %s498 = sphi 0, %s496
      %s499 = sphi 0, %s498
      %s513 = sphi 0, %s499
      %s519 = sphi 0, %s521
      %s522 = sphi 0, %s519
      %s523 = sphi 0, %s522
      %s539 = sphi 0, %s523
    $region4: #{qt_layer_forward.1} parent=1 // loop_header_branch
      %40 = sbr.rel (%p38) target = $region8
    $region5: #{qt_layer_forward.1} parent=1 // loop_body
      %s42 = ssub.s32 %s37, 1
      %s43 = ssub.s32 %s37, 2
      %s44 = sadd.s32 %s37, 1
      %s45 = ssub.s32 %s37, %s44
      %p46 = scmp.eq.s32.totalorder %s45, 0
      %s48 = sadd.s32 %s47, 1
      %s49 = scalar_select %p46, %s47, %s48
      %p52 = pneg %p46
      %p53 = scmp.eq.s32.totalorder %s37, 1
      %p54 = por %p52, %p53
      %p55 = scmp.ne.s32.totalorder %s47, %s50
      %p56 = scmp.eq.s32.totalorder %s37, 0
      %p57 = por %p55, %p56
      %p58 = scmp.ne.s32.totalorder %s47, %s50
      %p59 = scmp.eq.s32.totalorder %s42, 1
      %p60 = por %p58, %p59
      %p61 = scmp.ne.s32.totalorder %s50, %s51
      %p62 = scmp.eq.s32.totalorder %s42, 0
      %p63 = por %p61, %p62
      %p64 = scmp.ne.s32.totalorder %s50, %s51
      %p65 = scmp.eq.s32.totalorder %s43, 1
      %p66 = por %p64, %p65
      %p68 = scmp.ne.s32.totalorder %s51, %s67
      %p69 = scmp.eq.s32.totalorder %s43, 0
      %p70 = por %p68, %p69
      %s71 = ssub.s32 %s37, %s44
      %p72 = scmp.eq.s32.totalorder %s71, 0
      %s74 = sadd.s32 %s73, 1
      %s75 = scalar_select %p72, %s73, %s74
      %p78 = pneg %p72
      %p79 = scmp.eq.s32.totalorder %s37, 1
      %p80 = por %p78, %p79
      %p81 = scmp.ne.s32.totalorder %s73, %s76
      %p82 = scmp.eq.s32.totalorder %s37, 0
      %p83 = por %p81, %p82
      %p84 = scmp.ne.s32.totalorder %s73, %s76
      %p85 = scmp.eq.s32.totalorder %s42, 1
      %p86 = por %p84, %p85
      %p87 = scmp.ne.s32.totalorder %s76, %s77
      %p88 = scmp.eq.s32.totalorder %s42, 0
      %p89 = por %p87, %p88
      %p90 = scmp.ne.s32.totalorder %s76, %s77
      %p91 = scmp.eq.s32.totalorder %s43, 1
      %p92 = por %p90, %p91
      %p94 = scmp.ne.s32.totalorder %s77, %s93
      %p95 = scmp.eq.s32.totalorder %s43, 0
      %p96 = por %p94, %p95
      %s98 = sadd.s32 %s97, 1
      %p101 = scmp.eq.s32.totalorder %s37, 1
      %p102 = scmp.ne.s32.totalorder %s97, %s99
      %p103 = scmp.eq.s32.totalorder %s37, 0
      %p104 = por %p102, %p103
      %p105 = scmp.ne.s32.totalorder %s97, %s99
      %p106 = scmp.eq.s32.totalorder %s42, 1
      %p107 = por %p105, %p106
      %p108 = scmp.ne.s32.totalorder %s99, %s100
      %p109 = scmp.eq.s32.totalorder %s42, 0
      %p110 = por %p108, %p109
      %p111 = scmp.ne.s32.totalorder %s99, %s100
      %p112 = scmp.eq.s32.totalorder %s43, 1
      %p113 = por %p111, %p112
      %p115 = scmp.ne.s32.totalorder %s100, %s114
      %p116 = scmp.eq.s32.totalorder %s43, 0
      %p117 = por %p115, %p116
      %s119 = sadd.s32 %s118, 1
      %p122 = scmp.eq.s32.totalorder %s37, 1
      %p123 = scmp.ne.s32.totalorder %s118, %s120
      %p124 = scmp.eq.s32.totalorder %s37, 0
      %p125 = por %p123, %p124
      %p126 = scmp.ne.s32.totalorder %s118, %s120
      %p127 = scmp.eq.s32.totalorder %s42, 1
      %p128 = por %p126, %p127
      %p129 = scmp.ne.s32.totalorder %s120, %s121
      %p130 = scmp.eq.s32.totalorder %s42, 0
      %p131 = por %p129, %p130
      %p132 = scmp.ne.s32.totalorder %s120, %s121
      %p133 = scmp.eq.s32.totalorder %s43, 1
      %p134 = por %p132, %p133
      %p136 = scmp.ne.s32.totalorder %s121, %s135
      %p137 = scmp.eq.s32.totalorder %s43, 0
      %p138 = por %p136, %p137
      %s140 = sadd.s32 %s139, 1
      %p143 = scmp.eq.s32.totalorder %s37, 1
      %p144 = scmp.ne.s32.totalorder %s139, %s141
      %p145 = scmp.eq.s32.totalorder %s37, 0
      %p146 = por %p144, %p145
      %p147 = scmp.ne.s32.totalorder %s139, %s141
      %p148 = scmp.eq.s32.totalorder %s42, 1
      %p149 = por %p147, %p148
      %p150 = scmp.ne.s32.totalorder %s141, %s142
      %p151 = scmp.eq.s32.totalorder %s42, 0
      %p152 = por %p150, %p151
      %p153 = scmp.ne.s32.totalorder %s141, %s142
      %p154 = scmp.eq.s32.totalorder %s43, 1
      %p155 = por %p153, %p154
      %p157 = scmp.ne.s32.totalorder %s142, %s156
      %p158 = scmp.eq.s32.totalorder %s43, 0
      %p159 = por %p157, %p158
      %s161 = sadd.s32 %s160, 1
      %p164 = scmp.eq.s32.totalorder %s37, 1
      %p165 = scmp.ne.s32.totalorder %s160, %s162
      %p166 = scmp.eq.s32.totalorder %s37, 0
      %p167 = por %p165, %p166
      %p168 = scmp.ne.s32.totalorder %s160, %s162
      %p169 = scmp.eq.s32.totalorder %s42, 1
      %p170 = por %p168, %p169
      %p171 = scmp.ne.s32.totalorder %s162, %s163
      %p172 = scmp.eq.s32.totalorder %s42, 0
      %p173 = por %p171, %p172
      %p174 = scmp.ne.s32.totalorder %s162, %s163
      %p175 = scmp.eq.s32.totalorder %s43, 1
      %p176 = por %p174, %p175
      %p178 = scmp.ne.s32.totalorder %s163, %s177
      %p179 = scmp.eq.s32.totalorder %s43, 0
      %p180 = por %p178, %p179
      %s182 = sadd.s32 %s181, 1
      %p185 = scmp.eq.s32.totalorder %s37, 1
      %p186 = scmp.ne.s32.totalorder %s181, %s183
      %p187 = scmp.eq.s32.totalorder %s37, 0
      %p188 = por %p186, %p187
      %p189 = scmp.ne.s32.totalorder %s181, %s183
      %p190 = scmp.eq.s32.totalorder %s42, 1
      %p191 = por %p189, %p190
      %p192 = scmp.ne.s32.totalorder %s183, %s184
      %p193 = scmp.eq.s32.totalorder %s42, 0
      %p194 = por %p192, %p193
      %p195 = scmp.ne.s32.totalorder %s183, %s184
      %p196 = scmp.eq.s32.totalorder %s43, 1
      %p197 = por %p195, %p196
      %p199 = scmp.ne.s32.totalorder %s184, %s198
      %p200 = scmp.eq.s32.totalorder %s43, 0
      %p201 = por %p199, %p200
      %s203 = sadd.s32 %s202, 1
      %p206 = scmp.eq.s32.totalorder %s37, 1
      %p207 = scmp.ne.s32.totalorder %s202, %s204
      %p208 = scmp.eq.s32.totalorder %s37, 0
      %p209 = por %p207, %p208
      %p210 = scmp.ne.s32.totalorder %s202, %s204
      %p211 = scmp.eq.s32.totalorder %s42, 1
      %p212 = por %p210, %p211
      %p213 = scmp.ne.s32.totalorder %s204, %s205
      %p214 = scmp.eq.s32.totalorder %s42, 0
      %p215 = por %p213, %p214
      %p216 = scmp.ne.s32.totalorder %s204, %s205
      %p217 = scmp.eq.s32.totalorder %s43, 1
      %p218 = por %p216, %p217
      %p220 = scmp.ne.s32.totalorder %s205, %s219
      %p221 = scmp.eq.s32.totalorder %s43, 0
      %p222 = por %p220, %p221
      %s224 = sadd.s32 %s223, 1
      %p227 = scmp.eq.s32.totalorder %s37, 1
      %p228 = scmp.ne.s32.totalorder %s223, %s225
      %p229 = scmp.eq.s32.totalorder %s37, 0
      %p230 = por %p228, %p229
      %p231 = scmp.ne.s32.totalorder %s223, %s225
      %p232 = scmp.eq.s32.totalorder %s42, 1
      %p233 = por %p231, %p232
      %p234 = scmp.ne.s32.totalorder %s225, %s226
      %p235 = scmp.eq.s32.totalorder %s42, 0
      %p236 = por %p234, %p235
      %p237 = scmp.ne.s32.totalorder %s225, %s226
      %p238 = scmp.eq.s32.totalorder %s43, 1
      %p239 = por %p237, %p238
      %p241 = scmp.ne.s32.totalorder %s226, %s240
      %p242 = scmp.eq.s32.totalorder %s43, 0
      %p243 = por %p241, %p242
      %s245 = sadd.s32 %s244, 1
      %p248 = scmp.eq.s32.totalorder %s37, 1
      %p249 = scmp.ne.s32.totalorder %s244, %s246
      %p250 = scmp.eq.s32.totalorder %s37, 0
      %p251 = por %p249, %p250
      %p252 = scmp.ne.s32.totalorder %s244, %s246
      %p253 = scmp.eq.s32.totalorder %s42, 1
      %p254 = por %p252, %p253
      %p255 = scmp.ne.s32.totalorder %s246, %s247
      %p256 = scmp.eq.s32.totalorder %s42, 0
      %p257 = por %p255, %p256
      %p258 = scmp.ne.s32.totalorder %s246, %s247
      %p259 = scmp.eq.s32.totalorder %s43, 1
      %p260 = por %p258, %p259
      %p262 = scmp.ne.s32.totalorder %s247, %s261
      %p263 = scmp.eq.s32.totalorder %s43, 0
      %p264 = por %p262, %p263
      %s266 = sadd.s32 %s265, 1
      %p269 = scmp.eq.s32.totalorder %s37, 1
      %p270 = scmp.ne.s32.totalorder %s265, %s267
      %p271 = scmp.eq.s32.totalorder %s37, 0
      %p272 = por %p270, %p271
      %p273 = scmp.ne.s32.totalorder %s265, %s267
      %p274 = scmp.eq.s32.totalorder %s42, 1
      %p275 = por %p273, %p274
      %p276 = scmp.ne.s32.totalorder %s267, %s268
      %p277 = scmp.eq.s32.totalorder %s42, 0
      %p278 = por %p276, %p277
      %p279 = scmp.ne.s32.totalorder %s267, %s268
      %p280 = scmp.eq.s32.totalorder %s43, 1
      %p281 = por %p279, %p280
      %p283 = scmp.ne.s32.totalorder %s268, %s282
      %p284 = scmp.eq.s32.totalorder %s43, 0
      %p285 = por %p283, %p284
      %s287 = sadd.s32 %s286, 1
      %p290 = scmp.eq.s32.totalorder %s37, 1
      %p291 = scmp.ne.s32.totalorder %s286, %s288
      %p292 = scmp.eq.s32.totalorder %s37, 0
      %p293 = por %p291, %p292
      %p294 = scmp.ne.s32.totalorder %s286, %s288
      %p295 = scmp.eq.s32.totalorder %s42, 1
      %p296 = por %p294, %p295
      %p297 = scmp.ne.s32.totalorder %s288, %s289
      %p298 = scmp.eq.s32.totalorder %s42, 0
      %p299 = por %p297, %p298
      %p300 = scmp.ne.s32.totalorder %s288, %s289
      %p301 = scmp.eq.s32.totalorder %s43, 1
      %p302 = por %p300, %p301
      %p304 = scmp.ne.s32.totalorder %s289, %s303
      %p305 = scmp.eq.s32.totalorder %s43, 0
      %p306 = por %p304, %p305
      %s308 = sadd.s32 %s307, 1
      %p311 = scmp.eq.s32.totalorder %s37, 1
      %p312 = scmp.ne.s32.totalorder %s307, %s309
      %p313 = scmp.eq.s32.totalorder %s37, 0
      %p314 = por %p312, %p313
      %p315 = scmp.ne.s32.totalorder %s307, %s309
      %p316 = scmp.eq.s32.totalorder %s42, 1
      %p317 = por %p315, %p316
      %p318 = scmp.ne.s32.totalorder %s309, %s310
      %p319 = scmp.eq.s32.totalorder %s42, 0
      %p320 = por %p318, %p319
      %p321 = scmp.ne.s32.totalorder %s309, %s310
      %p322 = scmp.eq.s32.totalorder %s43, 1
      %p323 = por %p321, %p322
      %p325 = scmp.ne.s32.totalorder %s310, %s324
      %p326 = scmp.eq.s32.totalorder %s43, 0
      %p327 = por %p325, %p326
      %s329 = sadd.s32 %s328, 1
      %p332 = scmp.eq.s32.totalorder %s37, 1
      %p333 = scmp.ne.s32.totalorder %s328, %s330
      %p334 = scmp.eq.s32.totalorder %s37, 0
      %p335 = por %p333, %p334
      %p336 = scmp.ne.s32.totalorder %s328, %s330
      %p337 = scmp.eq.s32.totalorder %s42, 1
      %p338 = por %p336, %p337
      %p339 = scmp.ne.s32.totalorder %s330, %s331
      %p340 = scmp.eq.s32.totalorder %s42, 0
      %p341 = por %p339, %p340
      %p342 = scmp.ne.s32.totalorder %s330, %s331
      %p343 = scmp.eq.s32.totalorder %s43, 1
      %p344 = por %p342, %p343
      %p346 = scmp.ne.s32.totalorder %s331, %s345
      %p347 = scmp.eq.s32.totalorder %s43, 0
      %p348 = por %p346, %p347
      %s350 = sadd.s32 %s349, 1
      %p353 = scmp.eq.s32.totalorder %s37, 1
      %p354 = scmp.ne.s32.totalorder %s349, %s351
      %p355 = scmp.eq.s32.totalorder %s37, 0
      %p356 = por %p354, %p355
      %p357 = scmp.ne.s32.totalorder %s349, %s351
      %p358 = scmp.eq.s32.totalorder %s42, 1
      %p359 = por %p357, %p358
      %p360 = scmp.ne.s32.totalorder %s351, %s352
      %p361 = scmp.eq.s32.totalorder %s42, 0
      %p362 = por %p360, %p361
      %p363 = scmp.ne.s32.totalorder %s351, %s352
      %p364 = scmp.eq.s32.totalorder %s43, 1
      %p365 = por %p363, %p364
      %p367 = scmp.ne.s32.totalorder %s352, %s366
      %p368 = scmp.eq.s32.totalorder %s43, 0
      %p369 = por %p367, %p368
      %s371 = sadd.s32 %s370, 1
      %p374 = scmp.eq.s32.totalorder %s37, 1
      %p375 = scmp.ne.s32.totalorder %s370, %s372
      %p376 = scmp.eq.s32.totalorder %s37, 0
      %p377 = por %p375, %p376
      %p378 = scmp.ne.s32.totalorder %s370, %s372
      %p379 = scmp.eq.s32.totalorder %s42, 1
      %p380 = por %p378, %p379
      %p381 = scmp.ne.s32.totalorder %s372, %s373
      %p382 = scmp.eq.s32.totalorder %s42, 0
      %p383 = por %p381, %p382
      %p384 = scmp.ne.s32.totalorder %s372, %s373
      %p385 = scmp.eq.s32.totalorder %s43, 1
      %p386 = por %p384, %p385
      %p388 = scmp.ne.s32.totalorder %s373, %s387
      %p389 = scmp.eq.s32.totalorder %s43, 0
      %p390 = por %p388, %p389
      %s392 = sadd.s32 %s391, 1
      %p395 = scmp.eq.s32.totalorder %s37, 1
      %p396 = scmp.ne.s32.totalorder %s391, %s393
      %p397 = scmp.eq.s32.totalorder %s37, 0
      %p398 = por %p396, %p397
      %p399 = scmp.ne.s32.totalorder %s391, %s393
      %p400 = scmp.eq.s32.totalorder %s42, 1
      %p401 = por %p399, %p400
      %p402 = scmp.ne.s32.totalorder %s393, %s394
      %p403 = scmp.eq.s32.totalorder %s42, 0
      %p404 = por %p402, %p403
      %p405 = scmp.ne.s32.totalorder %s393, %s394
      %p406 = scmp.eq.s32.totalorder %s43, 1
      %p407 = por %p405, %p406
      %p409 = scmp.ne.s32.totalorder %s394, %s408
      %p410 = scmp.eq.s32.totalorder %s43, 0
      %p411 = por %p409, %p410
      %s413 = sadd.s32 %s412, 1
      %p416 = scmp.eq.s32.totalorder %s37, 1
      %p417 = scmp.ne.s32.totalorder %s412, %s414
      %p418 = scmp.eq.s32.totalorder %s37, 0
      %p419 = por %p417, %p418
      %p420 = scmp.ne.s32.totalorder %s412, %s414
      %p421 = scmp.eq.s32.totalorder %s42, 1
      %p422 = por %p420, %p421
      %p423 = scmp.ne.s32.totalorder %s414, %s415
      %p424 = scmp.eq.s32.totalorder %s42, 0
      %p425 = por %p423, %p424
      %p426 = scmp.ne.s32.totalorder %s414, %s415
      %p427 = scmp.eq.s32.totalorder %s43, 1
      %p428 = por %p426, %p427
      %p430 = scmp.ne.s32.totalorder %s415, %s429
      %p431 = scmp.eq.s32.totalorder %s43, 0
      %p432 = por %p430, %p431
      %s434 = sadd.s32 %s433, 1
      %p437 = scmp.eq.s32.totalorder %s37, 1
      %p438 = scmp.ne.s32.totalorder %s433, %s435
      %p439 = scmp.eq.s32.totalorder %s37, 0
      %p440 = por %p438, %p439
      %p441 = scmp.ne.s32.totalorder %s433, %s435
      %p442 = scmp.eq.s32.totalorder %s42, 1
      %p443 = por %p441, %p442
      %p444 = scmp.ne.s32.totalorder %s435, %s436
      %p445 = scmp.eq.s32.totalorder %s42, 0
      %p446 = por %p444, %p445
      %p447 = scmp.ne.s32.totalorder %s435, %s436
      %p448 = scmp.eq.s32.totalorder %s43, 1
      %p449 = por %p447, %p448
      %p451 = scmp.ne.s32.totalorder %s436, %s450
      %p452 = scmp.eq.s32.totalorder %s43, 0
      %p453 = por %p451, %p452
      %s455 = sadd.s32 %s454, 1
      %p458 = scmp.eq.s32.totalorder %s37, 1
      %p459 = scmp.ne.s32.totalorder %s454, %s456
      %p460 = scmp.eq.s32.totalorder %s37, 0
      %p461 = por %p459, %p460
      %p462 = scmp.ne.s32.totalorder %s454, %s456
      %p463 = scmp.eq.s32.totalorder %s42, 1
      %p464 = por %p462, %p463
      %p465 = scmp.ne.s32.totalorder %s456, %s457
      %p466 = scmp.eq.s32.totalorder %s42, 0
      %p467 = por %p465, %p466
      %p468 = scmp.ne.s32.totalorder %s456, %s457
      %p469 = scmp.eq.s32.totalorder %s43, 1
      %p470 = por %p468, %p469
      %p472 = scmp.ne.s32.totalorder %s457, %s471
      %p473 = scmp.eq.s32.totalorder %s43, 0
      %p474 = por %p472, %p473
      %s476 = sadd.s32 %s475, 1
      %p479 = scmp.eq.s32.totalorder %s37, 1
      %p480 = scmp.ne.s32.totalorder %s475, %s477
      %p481 = scmp.eq.s32.totalorder %s37, 0
      %p482 = por %p480, %p481
      %p483 = scmp.ne.s32.totalorder %s475, %s477
      %p484 = scmp.eq.s32.totalorder %s42, 1
      %p485 = por %p483, %p484
      %p486 = scmp.ne.s32.totalorder %s477, %s478
      %p487 = scmp.eq.s32.totalorder %s42, 0
      %p488 = por %p486, %p487
      %p489 = scmp.ne.s32.totalorder %s477, %s478
      %p490 = scmp.eq.s32.totalorder %s43, 1
      %p491 = por %p489, %p490
      %p493 = scmp.ne.s32.totalorder %s478, %s492
      %p494 = scmp.eq.s32.totalorder %s43, 0
      %p495 = por %p493, %p494
      %s497 = sadd.s32 %s496, 1
      %p500 = scmp.eq.s32.totalorder %s37, 1
      %p501 = scmp.ne.s32.totalorder %s496, %s498
      %p502 = scmp.eq.s32.totalorder %s37, 0
      %p503 = por %p501, %p502
      %p504 = scmp.ne.s32.totalorder %s496, %s498
      %p505 = scmp.eq.s32.totalorder %s42, 1
      %p506 = por %p504, %p505
      %p507 = scmp.ne.s32.totalorder %s498, %s499
      %p508 = scmp.eq.s32.totalorder %s42, 0
      %p509 = por %p507, %p508
      %p510 = scmp.ne.s32.totalorder %s498, %s499
      %p511 = scmp.eq.s32.totalorder %s43, 1
      %p512 = por %p510, %p511
      %p514 = scmp.ne.s32.totalorder %s499, %s513
      %p515 = scmp.eq.s32.totalorder %s43, 0
      %p516 = por %p514, %p515
      %s517 = ssub.s32 %s37, %s44
      %p518 = scmp.eq.s32.totalorder %s517, 0
      %s520 = sadd.s32 %s519, 1
      %s521 = scalar_select %p518, %s519, %s520
      %p524 = pneg %p518
      %p525 = scmp.eq.s32.totalorder %s37, 1
      %p526 = por %p524, %p525
      %p527 = scmp.ne.s32.totalorder %s519, %s522
      %p528 = scmp.eq.s32.totalorder %s37, 0
      %p529 = por %p527, %p528
      %p530 = scmp.ne.s32.totalorder %s519, %s522
      %p531 = scmp.eq.s32.totalorder %s42, 1
      %p532 = por %p530, %p531
      %p533 = scmp.ne.s32.totalorder %s522, %s523
      %p534 = scmp.eq.s32.totalorder %s42, 0
      %p535 = por %p533, %p534
      %p536 = scmp.ne.s32.totalorder %s522, %s523
      %p537 = scmp.eq.s32.totalorder %s43, 1
      %p538 = por %p536, %p537
      %p540 = scmp.ne.s32.totalorder %s523, %s539
      %p541 = scmp.eq.s32.totalorder %s43, 0
      %p542 = por %p540, %p541
      %p543 = scmp.le.s32.totalorder 1, %s37
      %p544 = scmp.lt.s32.totalorder %s37, 3
      %p545 = pnand %p543, %p544
      %p546 = pneg %p545
      // Predicated region
      $region9: #{qt_layer_forward.1} parent=5 // pred_check
        _
      $region10: #{qt_layer_forward.1} parent=5 // pred_check_branch
        %548 = sbr.rel (%p545) target = $region12
      $region11: #{qt_layer_forward.1} parent=5 // pred_region
        %s549 = ssub.s32 %s37, 1
        // Predicated region
        $region13: #{qt_layer_forward.1} parent=11 // pred_check
          %p550 = pneg %p110
        $region14: #{qt_layer_forward.1} parent=11 // pred_check_branch
          %552 = sbr.rel (%p550) target = $region16
        $region15: #{qt_layer_forward.1} parent=11 // pred_region
          _
        $region16: #{qt_layer_forward.1} parent=11 // pred_fallthru
          _
        // Predicated region
        $region17: #{qt_layer_forward.1} parent=11 // pred_check
          %p553 = pneg %p131
        $region18: #{qt_layer_forward.1} parent=11 // pred_check_branch
          %555 = sbr.rel (%p553) target = $region20
        $region19: #{qt_layer_forward.1} parent=11 // pred_region
          _
        $region20: #{qt_layer_forward.1} parent=11 // pred_fallthru
          _
        // Predicated region
        $region21: #{qt_layer_forward.1} parent=11 // pred_check
          %p556 = pneg %p152
        $region22: #{qt_layer_forward.1} parent=11 // pred_check_branch
          %558 = sbr.rel (%p556) target = $region24
        $region23: #{qt_layer_forward.1} parent=11 // pred_region
          %560 = vsyncadd [#allocation6], 0
          %s561 = sshll.u32 %s4, 4
          %s562 = int_to_ptr.hbm [resolvable:$true] %s561
          %s563 = sshll.u32 [#allocation5], 4
          %s564 = int_to_ptr.vmem [resolvable:$true] %s563
          %569 = dma.hbm_to_vmem [thread:$0]  %s562, 256, %s564, [#allocation6], 64, 64, 4
        $region24: #{qt_layer_forward.1} parent=11 // pred_fallthru
          _
        // Predicated region
        $region25: #{qt_layer_forward.1} parent=11 // pred_check
          %p570 = pneg %p173
        $region26: #{qt_layer_forward.1} parent=11 // pred_check_branch
          %572 = sbr.rel (%p570) target = $region28
        $region27: #{qt_layer_forward.1} parent=11 // pred_region
          _
        $region28: #{qt_layer_forward.1} parent=11 // pred_fallthru
          _
        // Predicated region
        $region29: #{qt_layer_forward.1} parent=11 // pred_check
          %p573 = pneg %p194
        $region30: #{qt_layer_forward.1} parent=11 // pred_check_branch
          %575 = sbr.rel (%p573) target = $region32
        $region31: #{qt_layer_forward.1} parent=11 // pred_region
          %577 = vsyncadd [#allocation6], 0
          %s578 = sshll.u32 %s6, 4
          %s579 = int_to_ptr.hbm [resolvable:$true] %s578
          %s580 = sshll.u32 [#allocation7], 4
          %s581 = int_to_ptr.vmem [resolvable:$true] %s580
          %586 = dma.hbm_to_vmem [thread:$0]  %s579, 256, %s581, [#allocation6], 64, 64, 4
        $region32: #{qt_layer_forward.1} parent=11 // pred_fallthru
          _
        // Predicated region
        $region33: #{qt_layer_forward.1} parent=11 // pred_check
          %p587 = pneg %p215
        $region34: #{qt_layer_forward.1} parent=11 // pred_check_branch
          %589 = sbr.rel (%p587) target = $region36
        $region35: #{qt_layer_forward.1} parent=11 // pred_region
          _
        $region36: #{qt_layer_forward.1} parent=11 // pred_fallthru
          _
        // Predicated region
        $region37: #{qt_layer_forward.1} parent=11 // pred_check
          %p590 = pneg %p236
        $region38: #{qt_layer_forward.1} parent=11 // pred_check_branch
          %592 = sbr.rel (%p590) target = $region40
        $region39: #{qt_layer_forward.1} parent=11 // pred_region
          _
        $region40: #{qt_layer_forward.1} parent=11 // pred_fallthru
          _
        // Predicated region
        $region41: #{qt_layer_forward.1} parent=11 // pred_check
          %p593 = pneg %p257
        $region42: #{qt_layer_forward.1} parent=11 // pred_check_branch
          %595 = sbr.rel (%p593) target = $region44
        $region43: #{qt_layer_forward.1} parent=11 // pred_region
          _
        $region44: #{qt_layer_forward.1} parent=11 // pred_fallthru
          _
        // Predicated region
        $region45: #{qt_layer_forward.1} parent=11 // pred_check
          %p596 = pneg %p278
        $region46: #{qt_layer_forward.1} parent=11 // pred_check_branch
          %598 = sbr.rel (%p596) target = $region48
        $region47: #{qt_layer_forward.1} parent=11 // pred_region
          %600 = vsyncadd [#allocation9], 0
          %s601 = sshll.u32 %s10, 4
          %s602 = int_to_ptr.hbm [resolvable:$true] %s601
          %s603 = sshll.u32 [#allocation8], 4
          %s604 = int_to_ptr.vmem [resolvable:$true] %s603
          %609 = dma.hbm_to_vmem [thread:$0]  %s602, 256, %s604, [#allocation9], 64, 64, 4
        $region48: #{qt_layer_forward.1} parent=11 // pred_fallthru
          _
        // Predicated region
        $region49: #{qt_layer_forward.1} parent=11 // pred_check
          %p610 = pneg %p299
        $region50: #{qt_layer_forward.1} parent=11 // pred_check_branch
          %612 = sbr.rel (%p610) target = $region52
        $region51: #{qt_layer_forward.1} parent=11 // pred_region
          _
        $region52: #{qt_layer_forward.1} parent=11 // pred_fallthru
          _
        // Predicated region
        $region53: #{qt_layer_forward.1} parent=11 // pred_check
          %p613 = pneg %p320
        $region54: #{qt_layer_forward.1} parent=11 // pred_check_branch
          %615 = sbr.rel (%p613) target = $region56
        $region55: #{qt_layer_forward.1} parent=11 // pred_region
          _
        $region56: #{qt_layer_forward.1} parent=11 // pred_fallthru
          _
        // Predicated region
        $region57: #{qt_layer_forward.1} parent=11 // pred_check
          %p616 = pneg %p341
        $region58: #{qt_layer_forward.1} parent=11 // pred_check_branch
          %618 = sbr.rel (%p616) target = $region60
        $region59: #{qt_layer_forward.1} parent=11 // pred_region
          _
        $region60: #{qt_layer_forward.1} parent=11 // pred_fallthru
          _
        // Predicated region
        $region61: #{qt_layer_forward.1} parent=11 // pred_check
          %p619 = pneg %p362
        $region62: #{qt_layer_forward.1} parent=11 // pred_check_branch
          %621 = sbr.rel (%p619) target = $region64
        $region63: #{qt_layer_forward.1} parent=11 // pred_region
          %623 = vsyncadd [#allocation9], 0
          %s624 = sshll.u32 %s14, 4
          %s625 = int_to_ptr.hbm [resolvable:$true] %s624
          %s626 = sshll.u32 [#allocation10], 4
          %s627 = int_to_ptr.vmem [resolvable:$true] %s626
          %632 = dma.hbm_to_vmem [thread:$0]  %s625, 256, %s627, [#allocation9], 64, 64, 4
        $region64: #{qt_layer_forward.1} parent=11 // pred_fallthru
          _
        // Predicated region
        $region65: #{qt_layer_forward.1} parent=11 // pred_check
          %p633 = pneg %p383
        $region66: #{qt_layer_forward.1} parent=11 // pred_check_branch
          %635 = sbr.rel (%p633) target = $region68
        $region67: #{qt_layer_forward.1} parent=11 // pred_region
          _
        $region68: #{qt_layer_forward.1} parent=11 // pred_fallthru
          _
        // Predicated region
        $region69: #{qt_layer_forward.1} parent=11 // pred_check
          %p636 = pneg %p404
        $region70: #{qt_layer_forward.1} parent=11 // pred_check_branch
          %638 = sbr.rel (%p636) target = $region72
        $region71: #{qt_layer_forward.1} parent=11 // pred_region
          _
        $region72: #{qt_layer_forward.1} parent=11 // pred_fallthru
          _
        // Predicated region
        $region73: #{qt_layer_forward.1} parent=11 // pred_check
          %p639 = pneg %p425
        $region74: #{qt_layer_forward.1} parent=11 // pred_check_branch
          %641 = sbr.rel (%p639) target = $region76
        $region75: #{qt_layer_forward.1} parent=11 // pred_region
          _
        $region76: #{qt_layer_forward.1} parent=11 // pred_fallthru
          _
        // Predicated region
        $region77: #{qt_layer_forward.1} parent=11 // pred_check
          %p642 = pneg %p446
        $region78: #{qt_layer_forward.1} parent=11 // pred_check_branch
          %644 = sbr.rel (%p642) target = $region80
        $region79: #{qt_layer_forward.1} parent=11 // pred_region
          %646 = vsyncadd [#allocation12], 0
          %s647 = sshll.u32 %s18, 4
          %s648 = int_to_ptr.hbm [resolvable:$true] %s647
          %s649 = sshll.u32 [#allocation11], 4
          %s650 = int_to_ptr.vmem [resolvable:$true] %s649
          %655 = dma.hbm_to_vmem [thread:$0]  %s648, 256, %s650, [#allocation12], 64, 64, 4
        $region80: #{qt_layer_forward.1} parent=11 // pred_fallthru
          _
        // Predicated region
        $region81: #{qt_layer_forward.1} parent=11 // pred_check
          %p656 = pneg %p467
        $region82: #{qt_layer_forward.1} parent=11 // pred_check_branch
          %658 = sbr.rel (%p656) target = $region84
        $region83: #{qt_layer_forward.1} parent=11 // pred_region
          %660 = vsyncadd [#allocation12], 0
          %s662 = sshll.u32 %s19, 4
          %s663 = int_to_ptr.hbm [resolvable:$true] %s662
          %s664 = sshll.u32 [#allocation13], 4
          %s665 = int_to_ptr.vmem [resolvable:$true] %s664
          %667 = dma.hbm_to_vmem [thread:$0]  %s663, 16, %s665, [#allocation12]
        $region84: #{qt_layer_forward.1} parent=11 // pred_fallthru
          _
        // Predicated region
        $region85: #{qt_layer_forward.1} parent=11 // pred_check
          %p668 = pneg %p488
        $region86: #{qt_layer_forward.1} parent=11 // pred_check_branch
          %670 = sbr.rel (%p668) target = $region88
        $region87: #{qt_layer_forward.1} parent=11 // pred_region
          _
        $region88: #{qt_layer_forward.1} parent=11 // pred_fallthru
          _
        // Predicated region
        $region89: #{qt_layer_forward.1} parent=11 // pred_check
          %p671 = pneg %p509
        $region90: #{qt_layer_forward.1} parent=11 // pred_check_branch
          %673 = sbr.rel (%p671) target = $region92
        $region91: #{qt_layer_forward.1} parent=11 // pred_region
          _
        $region92: #{qt_layer_forward.1} parent=11 // pred_fallthru
          _
      $region12: #{qt_layer_forward.1} parent=5 // pred_fallthru
        _
      %p674 = scmp.lt.s32.totalorder %s37, 2
      // Predicated region
      $region93: #{qt_layer_forward.1} parent=5 // pred_check
        %p675 = pneg %p674
      $region94: #{qt_layer_forward.1} parent=5 // pred_check_branch
        %677 = sbr.rel (%p675) target = $region96
      $region95: #{qt_layer_forward.1} parent=5 // pred_region
        // Predicated region
        $region97: #{qt_layer_forward.1} parent=95 // pred_check
          %p678 = pneg %p57
        $region98: #{qt_layer_forward.1} parent=95 // pred_check_branch
          %680 = sbr.rel (%p678) target = $region100
        $region99: #{qt_layer_forward.1} parent=95 // pred_region
          %p681 = scmp.lt.s32.totalorder %s37, 1
          %s682 = scalar_select %p681, %s37, 1
          %s683 = smul.addr %s682, 8
          %s684 = scalar_lea.vmem %s0, %s683
        $region100: #{qt_layer_forward.1} parent=95 // pred_fallthru
          _
        // Predicated region
        $region101: #{qt_layer_forward.1} parent=95 // pred_check
          %p685 = pneg %p83
        $region102: #{qt_layer_forward.1} parent=95 // pred_check_branch
          %687 = sbr.rel (%p685) target = $region104
        $region103: #{qt_layer_forward.1} parent=95 // pred_region
          %s688 = sand.u32 %s73, 1
          %s689 = scalar_lea.sflag [#allocation3], %s688
          %s690 = sand.u32 %s73, 1
          %s691 = smul.addr %s690, 8
          %s692 = scalar_lea.vmem [#allocation2], %s691
          %694 = vsyncadd %s689, 0
          %s695 = smul.addr %s37, 8
          %s696 = scalar_lea.hbm %s1, %s695
          %s698 = sshll.u32 %s696, 4
          %s699 = int_to_ptr.hbm [resolvable:$true] %s698
          %s700 = sshll.u32 %s692, 4
          %s701 = int_to_ptr.vmem [resolvable:$true] %s700
          %703 = dma.hbm_to_vmem [thread:$0]  %s699, 128, %s701, %s689
        $region104: #{qt_layer_forward.1} parent=95 // pred_fallthru
          _
      $region96: #{qt_layer_forward.1} parent=5 // pred_fallthru
        _
      %p704 = scmp.le.s32.totalorder 1, %s37
      %p705 = scmp.lt.s32.totalorder %s37, 3
      %p706 = pnand %p704, %p705
      %p707 = pneg %p706
      // Predicated region
      $region105: #{qt_layer_forward.1} parent=5 // pred_check
        _
      $region106: #{qt_layer_forward.1} parent=5 // pred_check_branch
        %709 = sbr.rel (%p706) target = $region108
      $region107: #{qt_layer_forward.1} parent=5 // pred_region
        %s710 = ssub.s32 %s37, 1
        %s711 = sand.u32 %s76, 1
        %s712 = scalar_lea.sflag [#allocation3], %s711
        %s713 = sand.u32 %s76, 1
        %s714 = smul.addr %s713, 8
        %s715 = scalar_lea.vmem [#allocation2], %s714
        // Predicated region
        $region109: #{qt_layer_forward.1} parent=107 // pred_check
          %p716 = pneg %p89
        $region110: #{qt_layer_forward.1} parent=107 // pred_check_branch
          %718 = sbr.rel (%p716) target = $region112
        $region111: #{qt_layer_forward.1} parent=107 // pred_region
          %720 = dma.done %s712, 128
        $region112: #{qt_layer_forward.1} parent=107 // pred_fallthru
          _
        // Predicated region
        $region113: #{qt_layer_forward.1} parent=107 // pred_check
          %p721 = pneg %p152
        $region114: #{qt_layer_forward.1} parent=107 // pred_check_branch
          %723 = sbr.rel (%p721) target = $region116
        $region115: #{qt_layer_forward.1} parent=107 // pred_region
          %725 = dma.done [#allocation6], 256
        $region116: #{qt_layer_forward.1} parent=107 // pred_fallthru
          _
        // Predicated region
        $region117: #{qt_layer_forward.1} parent=107 // pred_check
          %p726 = pneg %p194
        $region118: #{qt_layer_forward.1} parent=107 // pred_check_branch
          %728 = sbr.rel (%p726) target = $region120
        $region119: #{qt_layer_forward.1} parent=107 // pred_region
          %730 = dma.done [#allocation6], 256
        $region120: #{qt_layer_forward.1} parent=107 // pred_fallthru
          _
        // Predicated region
        $region121: #{qt_layer_forward.1} parent=107 // pred_check
          %p731 = pneg %p278
        $region122: #{qt_layer_forward.1} parent=107 // pred_check_branch
          %733 = sbr.rel (%p731) target = $region124
        $region123: #{qt_layer_forward.1} parent=107 // pred_region
          %735 = dma.done [#allocation9], 256
        $region124: #{qt_layer_forward.1} parent=107 // pred_fallthru
          _
        // Predicated region
        $region125: #{qt_layer_forward.1} parent=107 // pred_check
          %p736 = pneg %p362
        $region126: #{qt_layer_forward.1} parent=107 // pred_check_branch
          %738 = sbr.rel (%p736) target = $region128
        $region127: #{qt_layer_forward.1} parent=107 // pred_region
          %740 = dma.done [#allocation9], 256
        $region128: #{qt_layer_forward.1} parent=107 // pred_fallthru
          _
        // Predicated region
        $region129: #{qt_layer_forward.1} parent=107 // pred_check
          %p741 = pneg %p446
        $region130: #{qt_layer_forward.1} parent=107 // pred_check_branch
          %743 = sbr.rel (%p741) target = $region132
        $region131: #{qt_layer_forward.1} parent=107 // pred_region
          %745 = dma.done [#allocation12], 256
        $region132: #{qt_layer_forward.1} parent=107 // pred_fallthru
          _
        // Predicated region
        $region133: #{qt_layer_forward.1} parent=107 // pred_check
          %p746 = pneg %p467
        $region134: #{qt_layer_forward.1} parent=107 // pred_check_branch
          %748 = sbr.rel (%p746) target = $region136
        $region135: #{qt_layer_forward.1} parent=107 // pred_region
          %750 = dma.done [#allocation12], 16
        $region136: #{qt_layer_forward.1} parent=107 // pred_fallthru
          _
        %p751 = scmp.lt.s32.totalorder %s42, 1
        %s752 = scalar_select %p751, %s42, 1
        %s753 = smul.addr %s752, 8
        %s754 = scalar_lea.vmem %s0, %s753
        %p755 = pneg %p63
        %p756 = pneg %p60
        %s757 = sand.u32 %s76, 1
        %s758 = scalar_lea.sflag [#allocation3], %s757
        %s759 = sand.u32 %s76, 1
        %s760 = smul.addr %s759, 8
        %s761 = scalar_lea.vmem [#allocation2], %s760
        %p762 = pneg %p89
        %p763 = pneg %p86
        %p764 = pneg %p110
        %p765 = pneg %p107
        %p766 = pneg %p131
        %p767 = pneg %p128
        %p768 = pneg %p152
        %p769 = pneg %p149
        %p770 = pneg %p173
        %p771 = pneg %p170
        %p772 = pneg %p194
        %p773 = pneg %p191
        %p774 = pneg %p215
        %p775 = pneg %p212
        %p776 = pneg %p236
        %p777 = pneg %p233
        %p778 = pneg %p257
        %p779 = pneg %p254
        %p780 = pneg %p278
        %p781 = pneg %p275
        %p782 = pneg %p299
        %p783 = pneg %p296
        %p784 = pneg %p320
        %p785 = pneg %p317
        %p786 = pneg %p341
        %p787 = pneg %p338
        %p788 = pneg %p362
        %p789 = pneg %p359
        %p790 = pneg %p383
        %p791 = pneg %p380
        %p792 = pneg %p404
        %p793 = pneg %p401
        %p794 = pneg %p425
        %p795 = pneg %p422
        %p796 = pneg %p446
        %p797 = pneg %p443
        %p798 = pneg %p467
        %p799 = pneg %p464
        %p800 = pneg %p488
        %p801 = pneg %p485
        %p802 = pneg %p509
        %p803 = pneg %p506
        %p804 = pneg %p535
        %p805 = pneg %p532
        %s806 = sand.u32 %s522, 1
        %s807 = scalar_lea.sflag [#allocation4], %s806
        %s808 = sand.u32 %s522, 1
        %s809 = smul.addr %s808, 8
        %s810 = scalar_lea.vmem [#allocation14], %s809
        %p811 = scmp.lt.s32.totalorder %s42, 1
        %s812 = scalar_select %p811, %s42, 1
        %s813 = smul.addr %s812, 8
        %s814 = scalar_lea.vmem %s0, %s813
        %v816 = vld [vmem:[%s814] sm:$0xff]
        %v817 = vld [vmem:[%s715] sm:$0xff]
        %v818 = vld [vmem:[%s2] sm:$0x1]
        %v819 = vld [vmem:[%s3] sm:$0x1]
        %vm820 = vcmask 261120
        %v821 = vsel %vm820, %v816, 0.0
        %822 = vadd.xlane.f32.xlu0 %v821
        %v823 = vpop.xlane.xlu0 %822
        %v824 = vrcp.pop 32.0
        %v825 = vmul.f32 32.0, %v824
        %v826 = vsub.f32 1.0, %v825
        %v827 = vmul.f32 %v824, %v826
        %v828 = vadd.f32 %v824, %v827
        %vm829 = vweird.f32 %v824
        %v830 = vsel %vm829, %v824, %v828
        %v831 = vmul.f32 %v823, %v830
        %v832 = vsub.f32 %v816, %v831
        %v833 = vmul.f32 %v832, %v832
        %v834 = vsel %vm820, %v833, 0.0
        %835 = vadd.xlane.f32.xlu0 %v834
        %v836 = vpop.xlane.xlu0 %835
        %v837 = vmul.f32 %v836, %v830
        %v838 = vadd.f32 %v837, 1e-12
        %v839 = vrsqrt.pop %v838
        %v840 = vmul.f32 %v839, %v838
        %v841 = vmul.f32 %v840, %v839
        %v842 = vmul.f32 0.5, %v841
        %v843 = vsub.f32 1.5, %v842
        %v844 = vmul.f32 %v839, %v843
        %vm845 = vweird.f32 %v838
        %vm846 = vweird.f32 %v839
        %vm847 = vmor %vm845, %vm846
        %v848 = vsel %vm847, %v839, %v844
        %v849 = vmul.f32 %v832, %v848
        %v851 = vperm.slane %v818, 0
        %v853 = vmul.f32 %v849, %v851
        %v855 = vperm.slane %v819, 0
        %v857 = vadd.f32 %v853, %v855
        %v858 = vld [vmem:[#allocation5] sm:$0xf]
        %v859 = vld [vmem:[#allocation5 + $0x4] sm:$0xf]
        %v860 = vld [vmem:[#allocation5 + $0x8] sm:$0xf]
        %v861 = vld [vmem:[#allocation5 + $0xc] sm:$0xf]
        %v862 = vld [vmem:[%s5] sm:$0x1]
        %v863 = vpack.c.bf16 %v857, %v857
        %v865 = vperm.slane %v862, 0
        %v871 = vunpack.c.l.b16 %v858
        %v872 = vunpack.c.l.b16 %v859
        %v873 = vunpack.c.l.b16 %v860
        %v874 = vunpack.c.l.b16 %v861
        %v875 = vpack.c.b16 %v872, %v871
        %v876 = vpack.c.b16 %v874, %v873
        %v880 = vsel %vm820, %v863, 0
        %882 = vmatpush.bf16.msra.mxu0 0
        %883 = vmatpush.bf16.msra.mxu0 0
        %884 = vmatpush.bf16.msra.mxu0 0
        %885 = vmatpush.bf16.msra.mxu0 0
        %886 = vmatpush.bf16.msra.mxu0 0
        %887 = vmatpush.bf16.msra.mxu0 0
        %888 = vmatpush.bf16.msra.mxu0 %v876
        %889 = vmatpush.bf16.msra.mxu0 %v875
        %890 = vmatmul.bf16.gmra.mxu0 %v880
        %v891 = vpop.f32.mrf.mxu0
        %v892 = vadd.f32 %v865, %v891
        %v893 = vpop.f32.mrf.mxu0
        %894 = vdwg.mxu0
        %896 = vrot.lane.b32.xlu0 %v892, 120
        %v897 = vpop.permute.xlu0 %896
        %899 = vrot.lane.b32.xlu0 %v892, 112
        %v900 = vpop.permute.xlu0 %899
        %902 = vrot.lane.b32.xlu0 %v892, 104
        %v903 = vpop.permute.xlu0 %902
        %v905 = vrot.slane %v900, 4
        %vm906 = vcmask 1047556
        %v907 = vsel %vm906, %v905, %v892
        %v908 = vrot.slane %v892, 4
        %v909 = vsel %vm906, %v900, %v908
        %v911 = vunpack.c.l.s4 1983009808
        %v912 = vunpack.c.0.s8 %v911
        %v913 = vperm.slane %v907, %v912
        %v915 = vunpack.c.l.s4 1983009808
        %v916 = vunpack.c.0.s8 %v915
        %v917 = vperm.slane %v909, %v916
        %v918 = vrot.slane %v903, 4
        %v919 = vsel %vm906, %v918, %v897
        %v920 = vrot.slane %v897, 4
        %v921 = vsel %vm906, %v903, %v920
        %v923 = vunpack.c.l.s4 1983009808
        %v924 = vunpack.c.0.s8 %v923
        %v925 = vperm.slane %v919, %v924
        %v927 = vunpack.c.l.s4 1983009808
        %v928 = vunpack.c.0.s8 %v927
        %v929 = vperm.slane %v921, %v928
        %v930 = vrot.slane %v925, 4
        %v931 = vsel %vm906, %v930, %v913
        %v932 = vrot.slane %v913, 4
        %v933 = vsel %vm906, %v925, %v932
        %v935 = vunpack.c.l.s4 1934713408
        %v936 = vunpack.c.0.s8 %v935
        %v937 = vperm.slane %v931, %v936
        %v939 = vunpack.c.l.s4 1934713408
        %v940 = vunpack.c.0.s8 %v939
        %v941 = vperm.slane %v933, %v940
        %v942 = vrot.slane %v929, 4
        %v943 = vsel %vm906, %v942, %v917
        %v944 = vrot.slane %v917, 4
        %v945 = vsel %vm906, %v929, %v944
        %v947 = vunpack.c.l.s4 1934713408
        %v948 = vunpack.c.0.s8 %v947
        %v949 = vperm.slane %v943, %v948
        %v951 = vunpack.c.l.s4 1934713408
        %v952 = vunpack.c.0.s8 %v951
        %v953 = vperm.slane %v945, %v952
        %v954 = vrot.slane %v937, 4
        %v955 = vsel %vm906, 0.0, %v954
        %v956 = vrot.slane %v941, 4
        %v957 = vsel %vm906, 0.0, %v956
        %v958 = vrot.slane %v949, 4
        %v959 = vsel %vm906, 0.0, %v958
        %v960 = vrot.slane %v953, 4
        %v961 = vsel %vm906, 0.0, %v960
        %v962 = vsel %vm906, %v956, %v937
        %v964 = vunpack.c.l.s4 1983009808
        %v965 = vunpack.c.0.s8 %v964
        %v966 = vperm.slane %v962, %v965
        %v967 = vrot.slane %v957, 4
        %v968 = vsel %vm906, %v967, %v955
        %v970 = vunpack.c.l.s4 1983009808
        %v971 = vunpack.c.0.s8 %v970
        %v972 = vperm.slane %v968, %v971
        %v973 = vsel %vm906, %v960, %v949
        %v975 = vunpack.c.l.s4 1983009808
        %v976 = vunpack.c.0.s8 %v975
        %v977 = vperm.slane %v973, %v976
        %v978 = vrot.slane %v961, 4
        %v979 = vsel %vm906, %v978, %v959
        %v981 = vunpack.c.l.s4 1983009808
        %v982 = vunpack.c.0.s8 %v981
        %v983 = vperm.slane %v979, %v982
        %v984 = vrot.slane %v972, 4
        %v985 = vsel %vm906, %v984, %v966
        %v986 = vrot.slane %v966, 4
        %v987 = vsel %vm906, %v972, %v986
        %v989 = vunpack.c.l.s4 1934713408
        %v990 = vunpack.c.0.s8 %v989
        %v991 = vperm.slane %v985, %v990
        %v993 = vunpack.c.l.s4 1934713408
        %v994 = vunpack.c.0.s8 %v993
        %v995 = vperm.slane %v987, %v994
        %v996 = vrot.slane %v983, 4
        %v997 = vsel %vm906, %v996, %v977
        %v998 = vrot.slane %v977, 4
        %v999 = vsel %vm906, %v983, %v998
        %v1001 = vunpack.c.l.s4 1934713408
        %v1002 = vunpack.c.0.s8 %v1001
        %v1003 = vperm.slane %v997, %v1002
        %v1005 = vunpack.c.l.s4 1934713408
        %v1006 = vunpack.c.0.s8 %v1005
        %v1007 = vperm.slane %v999, %v1006
        %v1008 = vrot.slane %v1003, 4
        %v1009 = vsel %vm906, %v1008, %v991
        %v1010 = vrot.slane %v991, 4
        %v1011 = vsel %vm906, %v1003, %v1010
        %v1012 = vrot.slane %v1007, 4
        %v1013 = vsel %vm906, %v1012, %v995
        %v1014 = vrot.slane %v995, 4
        %v1015 = vsel %vm906, %v1007, %v1014
        %v1016 = vpack.c.bf16 %v1009, %v1009
        %v1017 = vpack.c.bf16 %v1011, %v1011
        %v1018 = vpack.c.bf16 %v1013, %v1013
        %v1019 = vpack.c.bf16 %v1015, %v1015
        %1020 = vrot.lane.b32.xlu0 %v892, 96
        %v1021 = vpop.permute.xlu0 %1020
        %1022 = vrot.lane.b32.xlu0 %v897, 96
        %v1023 = vpop.permute.xlu0 %1022
        %1024 = vrot.lane.b32.xlu0 %v900, 96
        %v1025 = vpop.permute.xlu0 %1024
        %1026 = vrot.lane.b32.xlu0 %v903, 96
        %v1027 = vpop.permute.xlu0 %1026
        %v1032 = vrot.slane %v1025, 4
        %v1033 = vsel %vm906, %v1032, %v1021
        %v1034 = vrot.slane %v1021, 4
        %v1035 = vsel %vm906, %v1025, %v1034
        %v1037 = vunpack.c.l.s4 1983009808
        %v1038 = vunpack.c.0.s8 %v1037
        %v1039 = vperm.slane %v1033, %v1038
        %v1041 = vunpack.c.l.s4 1983009808
        %v1042 = vunpack.c.0.s8 %v1041
        %v1043 = vperm.slane %v1035, %v1042
        %v1044 = vrot.slane %v1027, 4
        %v1045 = vsel %vm906, %v1044, %v1023
        %v1046 = vrot.slane %v1023, 4
        %v1047 = vsel %vm906, %v1027, %v1046
        %v1049 = vunpack.c.l.s4 1983009808
        %v1050 = vunpack.c.0.s8 %v1049
        %v1051 = vperm.slane %v1045, %v1050
        %v1053 = vunpack.c.l.s4 1983009808
        %v1054 = vunpack.c.0.s8 %v1053
        %v1055 = vperm.slane %v1047, %v1054
        %v1056 = vrot.slane %v1051, 4
        %v1057 = vsel %vm906, %v1056, %v1039
        %v1058 = vrot.slane %v1039, 4
        %v1059 = vsel %vm906, %v1051, %v1058
        %v1061 = vunpack.c.l.s4 1934713408
        %v1062 = vunpack.c.0.s8 %v1061
        %v1063 = vperm.slane %v1057, %v1062
        %v1065 = vunpack.c.l.s4 1934713408
        %v1066 = vunpack.c.0.s8 %v1065
        %v1067 = vperm.slane %v1059, %v1066
        %v1068 = vrot.slane %v1055, 4
        %v1069 = vsel %vm906, %v1068, %v1043
        %v1070 = vrot.slane %v1043, 4
        %v1071 = vsel %vm906, %v1055, %v1070
        %v1073 = vunpack.c.l.s4 1934713408
        %v1074 = vunpack.c.0.s8 %v1073
        %v1075 = vperm.slane %v1069, %v1074
        %v1077 = vunpack.c.l.s4 1934713408
        %v1078 = vunpack.c.0.s8 %v1077
        %v1079 = vperm.slane %v1071, %v1078
        %v1080 = vrot.slane %v1063, 4
        %v1081 = vsel %vm906, 0.0, %v1080
        %v1082 = vrot.slane %v1067, 4
        %v1083 = vsel %vm906, 0.0, %v1082
        %v1084 = vrot.slane %v1075, 4
        %v1085 = vsel %vm906, 0.0, %v1084
        %v1086 = vrot.slane %v1079, 4
        %v1087 = vsel %vm906, 0.0, %v1086
        %v1088 = vsel %vm906, %v1082, %v1063
        %v1090 = vunpack.c.l.s4 1983009808
        %v1091 = vunpack.c.0.s8 %v1090
        %v1092 = vperm.slane %v1088, %v1091
        %v1093 = vrot.slane %v1083, 4
        %v1094 = vsel %vm906, %v1093, %v1081
        %v1096 = vunpack.c.l.s4 1983009808
        %v1097 = vunpack.c.0.s8 %v1096
        %v1098 = vperm.slane %v1094, %v1097
        %v1099 = vsel %vm906, %v1086, %v1075
        %v1101 = vunpack.c.l.s4 1983009808
        %v1102 = vunpack.c.0.s8 %v1101
        %v1103 = vperm.slane %v1099, %v1102
        %v1104 = vrot.slane %v1087, 4
        %v1105 = vsel %vm906, %v1104, %v1085
        %v1107 = vunpack.c.l.s4 1983009808
        %v1108 = vunpack.c.0.s8 %v1107
        %v1109 = vperm.slane %v1105, %v1108
        %v1110 = vrot.slane %v1098, 4
        %v1111 = vsel %vm906, %v1110, %v1092
        %v1112 = vrot.slane %v1092, 4
        %v1113 = vsel %vm906, %v1098, %v1112
        %v1115 = vunpack.c.l.s4 1934713408
        %v1116 = vunpack.c.0.s8 %v1115
        %v1117 = vperm.slane %v1111, %v1116
        %v1119 = vunpack.c.l.s4 1934713408
        %v1120 = vunpack.c.0.s8 %v1119
        %v1121 = vperm.slane %v1113, %v1120
        %v1122 = vrot.slane %v1109, 4
        %v1123 = vsel %vm906, %v1122, %v1103
        %v1124 = vrot.slane %v1103, 4
        %v1125 = vsel %vm906, %v1109, %v1124
        %v1127 = vunpack.c.l.s4 1934713408
        %v1128 = vunpack.c.0.s8 %v1127
        %v1129 = vperm.slane %v1123, %v1128
        %v1131 = vunpack.c.l.s4 1934713408
        %v1132 = vunpack.c.0.s8 %v1131
        %v1133 = vperm.slane %v1125, %v1132
        %v1134 = vrot.slane %v1129, 4
        %v1135 = vsel %vm906, %v1134, %v1117
        %v1136 = vrot.slane %v1117, 4
        %v1137 = vsel %vm906, %v1129, %v1136
        %v1138 = vrot.slane %v1133, 4
        %v1139 = vsel %vm906, %v1138, %v1121
        %v1140 = vrot.slane %v1121, 4
        %v1141 = vsel %vm906, %v1133, %v1140
        %v1142 = vpack.c.bf16 %v1135, %v1135
        %v1143 = vpack.c.bf16 %v1137, %v1137
        %v1144 = vpack.c.bf16 %v1139, %v1139
        %v1145 = vpack.c.bf16 %v1141, %v1141
        %1146 = vrot.lane.b32.xlu0 %v892, 64
        %v1147 = vpop.permute.xlu0 %1146
        %1148 = vrot.lane.b32.xlu0 %v897, 64
        %v1149 = vpop.permute.xlu0 %1148
        %1150 = vrot.lane.b32.xlu0 %v900, 64
        %v1151 = vpop.permute.xlu0 %1150
        %1152 = vrot.lane.b32.xlu0 %v903, 64
        %v1153 = vpop.permute.xlu0 %1152
        %v1158 = vrot.slane %v1151, 4
        %v1159 = vsel %vm906, %v1158, %v1147
        %v1160 = vrot.slane %v1147, 4
        %v1161 = vsel %vm906, %v1151, %v1160
        %v1163 = vunpack.c.l.s4 1983009808
        %v1164 = vunpack.c.0.s8 %v1163
        %v1165 = vperm.slane %v1159, %v1164
        %v1167 = vunpack.c.l.s4 1983009808
        %v1168 = vunpack.c.0.s8 %v1167
        %v1169 = vperm.slane %v1161, %v1168
        %v1170 = vrot.slane %v1153, 4
        %v1171 = vsel %vm906, %v1170, %v1149
        %v1172 = vrot.slane %v1149, 4
        %v1173 = vsel %vm906, %v1153, %v1172
        %v1175 = vunpack.c.l.s4 1983009808
        %v1176 = vunpack.c.0.s8 %v1175
        %v1177 = vperm.slane %v1171, %v1176
        %v1179 = vunpack.c.l.s4 1983009808
        %v1180 = vunpack.c.0.s8 %v1179
        %v1181 = vperm.slane %v1173, %v1180
        %v1182 = vrot.slane %v1177, 4
        %v1183 = vsel %vm906, %v1182, %v1165
        %v1184 = vrot.slane %v1165, 4
        %v1185 = vsel %vm906, %v1177, %v1184
        %v1187 = vunpack.c.l.s4 1934713408
        %v1188 = vunpack.c.0.s8 %v1187
        %v1189 = vperm.slane %v1183, %v1188
        %v1191 = vunpack.c.l.s4 1934713408
        %v1192 = vunpack.c.0.s8 %v1191
        %v1193 = vperm.slane %v1185, %v1192
        %v1194 = vrot.slane %v1181, 4
        %v1195 = vsel %vm906, %v1194, %v1169
        %v1196 = vrot.slane %v1169, 4
        %v1197 = vsel %vm906, %v1181, %v1196
        %v1199 = vunpack.c.l.s4 1934713408
        %v1200 = vunpack.c.0.s8 %v1199
        %v1201 = vperm.slane %v1195, %v1200
        %v1203 = vunpack.c.l.s4 1934713408
        %v1204 = vunpack.c.0.s8 %v1203
        %v1205 = vperm.slane %v1197, %v1204
        %v1206 = vrot.slane %v1189, 4
        %v1207 = vsel %vm906, 0.0, %v1206
        %v1208 = vrot.slane %v1193, 4
        %v1209 = vsel %vm906, 0.0, %v1208
        %v1210 = vrot.slane %v1201, 4
        %v1211 = vsel %vm906, 0.0, %v1210
        %v1212 = vrot.slane %v1205, 4
        %v1213 = vsel %vm906, 0.0, %v1212
        %v1214 = vsel %vm906, %v1208, %v1189
        %v1216 = vunpack.c.l.s4 1983009808
        %v1217 = vunpack.c.0.s8 %v1216
        %v1218 = vperm.slane %v1214, %v1217
        %v1219 = vrot.slane %v1209, 4
        %v1220 = vsel %vm906, %v1219, %v1207
        %v1222 = vunpack.c.l.s4 1983009808
        %v1223 = vunpack.c.0.s8 %v1222
        %v1224 = vperm.slane %v1220, %v1223
        %v1225 = vsel %vm906, %v1212, %v1201
        %v1227 = vunpack.c.l.s4 1983009808
        %v1228 = vunpack.c.0.s8 %v1227
        %v1229 = vperm.slane %v1225, %v1228
        %v1230 = vrot.slane %v1213, 4
        %v1231 = vsel %vm906, %v1230, %v1211
        %v1233 = vunpack.c.l.s4 1983009808
        %v1234 = vunpack.c.0.s8 %v1233
        %v1235 = vperm.slane %v1231, %v1234
        %v1236 = vrot.slane %v1224, 4
        %v1237 = vsel %vm906, %v1236, %v1218
        %v1238 = vrot.slane %v1218, 4
        %v1239 = vsel %vm906, %v1224, %v1238
        %v1241 = vunpack.c.l.s4 1934713408
        %v1242 = vunpack.c.0.s8 %v1241
        %v1243 = vperm.slane %v1237, %v1242
        %v1245 = vunpack.c.l.s4 1934713408
        %v1246 = vunpack.c.0.s8 %v1245
        %v1247 = vperm.slane %v1239, %v1246
        %v1248 = vrot.slane %v1235, 4
        %v1249 = vsel %vm906, %v1248, %v1229
        %v1250 = vrot.slane %v1229, 4
        %v1251 = vsel %vm906, %v1235, %v1250
        %v1253 = vunpack.c.l.s4 1934713408
        %v1254 = vunpack.c.0.s8 %v1253
        %v1255 = vperm.slane %v1249, %v1254
        %v1257 = vunpack.c.l.s4 1934713408
        %v1258 = vunpack.c.0.s8 %v1257
        %v1259 = vperm.slane %v1251, %v1258
        %v1260 = vrot.slane %v1255, 4
        %v1261 = vsel %vm906, %v1260, %v1243
        %v1262 = vrot.slane %v1243, 4
        %v1263 = vsel %vm906, %v1255, %v1262
        %v1264 = vrot.slane %v1259, 4
        %v1265 = vsel %vm906, %v1264, %v1247
        %v1266 = vrot.slane %v1247, 4
        %v1267 = vsel %vm906, %v1259, %v1266
        %v1268 = vpack.c.bf16 %v1261, %v1261
        %v1269 = vpack.c.bf16 %v1263, %v1263
        %v1270 = vpack.c.bf16 %v1265, %v1265
        %v1271 = vpack.c.bf16 %v1267, %v1267
        %vm1272 = vcmask 64512
        %v1274 = vsel %vm1272, %v1016, 0
        %v1277 = vsel %vm1272, %v1142, 0
        %1279 = vmatpush.bf16.xpose.msra.mxu0 0
        %1280 = vmatpush.bf16.xpose.msra.mxu0 0
        %1281 = vmatpush.bf16.xpose.msra.mxu0 0
        %1282 = vmatpush.bf16.xpose.msra.mxu0 0
        %1283 = vmatpush.bf16.xpose.msra.mxu0 0
        %1284 = vmatpush.bf16.xpose.msra.mxu0 0
        %1285 = vmatpush.bf16.xpose.msra.mxu0 0
        %1286 = vmatpush.bf16.xpose.msra.mxu0 %v1277
        %1287 = vmatmul.bf16.gmra.mxu0 %v1274
        %v1288 = vpop.f32.mrf.mxu0
        %v1289 = vadd.f32 0.0, %v1288
        %v1290 = vpop.f32.mrf.mxu0
        %1291 = vdwg.mxu0
        %v1293 = vsel %vm1272, %v1017, 0
        %v1296 = vsel %vm1272, %v1143, 0
        %1298 = vmatpush.bf16.xpose.msra.mxu0 0
        %1299 = vmatpush.bf16.xpose.msra.mxu0 0
        %1300 = vmatpush.bf16.xpose.msra.mxu0 0
        %1301 = vmatpush.bf16.xpose.msra.mxu0 0
        %1302 = vmatpush.bf16.xpose.msra.mxu0 0
        %1303 = vmatpush.bf16.xpose.msra.mxu0 0
        %1304 = vmatpush.bf16.xpose.msra.mxu0 0
        %1305 = vmatpush.bf16.xpose.msra.mxu0 %v1296
        %1306 = vmatmul.bf16.gmra.mxu0 %v1293
        %v1307 = vpop.f32.mrf.mxu0
        %v1308 = vadd.f32 0.0, %v1307
        %v1309 = vpop.f32.mrf.mxu0
        %1310 = vdwg.mxu0
        %v1312 = vsel %vm1272, %v1018, 0
        %v1315 = vsel %vm1272, %v1144, 0
        %1317 = vmatpush.bf16.xpose.msra.mxu0 0
        %1318 = vmatpush.bf16.xpose.msra.mxu0 0
        %1319 = vmatpush.bf16.xpose.msra.mxu0 0
        %1320 = vmatpush.bf16.xpose.msra.mxu0 0
        %1321 = vmatpush.bf16.xpose.msra.mxu0 0
        %1322 = vmatpush.bf16.xpose.msra.mxu0 0
        %1323 = vmatpush.bf16.xpose.msra.mxu0 0
        %1324 = vmatpush.bf16.xpose.msra.mxu0 %v1315
        %1325 = vmatmul.bf16.gmra.mxu0 %v1312
        %v1326 = vpop.f32.mrf.mxu0
        %v1327 = vadd.f32 0.0, %v1326
        %v1328 = vpop.f32.mrf.mxu0
        %1329 = vdwg.mxu0
        %v1331 = vsel %vm1272, %v1019, 0
        %v1334 = vsel %vm1272, %v1145, 0
        %1336 = vmatpush.bf16.xpose.msra.mxu0 0
        %1337 = vmatpush.bf16.xpose.msra.mxu0 0
        %1338 = vmatpush.bf16.xpose.msra.mxu0 0
        %1339 = vmatpush.bf16.xpose.msra.mxu0 0
        %1340 = vmatpush.bf16.xpose.msra.mxu0 0
        %1341 = vmatpush.bf16.xpose.msra.mxu0 0
        %1342 = vmatpush.bf16.xpose.msra.mxu0 0
        %1343 = vmatpush.bf16.xpose.msra.mxu0 %v1334
        %1344 = vmatmul.bf16.gmra.mxu0 %v1331
        %v1345 = vpop.f32.mrf.mxu0
        %v1346 = vadd.f32 0.0, %v1345
        %v1347 = vpop.f32.mrf.mxu0
        %1348 = vdwg.mxu0
        %v1349 = vsel %vm1272, %v1289, -inf
        %1350 = vmax.xlane.f32.xlu0 %v1349
        %v1351 = vpop.xlane.xlu0 %1350
        %v1352 = vsel %vm1272, %v1308, -inf
        %1353 = vmax.xlane.f32.xlu0 %v1352
        %v1354 = vpop.xlane.xlu0 %1353
        %v1355 = vsel %vm1272, %v1327, -inf
        %1356 = vmax.xlane.f32.xlu0 %v1355
        %v1357 = vpop.xlane.xlu0 %1356
        %v1358 = vsel %vm1272, %v1346, -inf
        %1359 = vmax.xlane.f32.xlu0 %v1358
        %v1360 = vpop.xlane.xlu0 %1359
        %v1361 = vsub.f32 %v1289, %v1351
        %v1362 = vsub.f32 %v1308, %v1354
        %v1363 = vsub.f32 %v1327, %v1357
        %v1364 = vsub.f32 %v1346, %v1360
        %v1365 = vmul.f32 %v1361, 1.442695
        %v1366 = vpow.pop %v1365
        %v1367 = vmul.f32 %v1362, 1.442695
        %v1368 = vpow.pop %v1367
        %v1369 = vmul.f32 %v1363, 1.442695
        %v1370 = vpow.pop %v1369
        %v1371 = vmul.f32 %v1364, 1.442695
        %v1372 = vpow.pop %v1371
        %v1373 = vsel %vm1272, %v1366, 0.0
        %1374 = vadd.xlane.f32.xlu0 %v1373
        %v1375 = vpop.xlane.xlu0 %1374
        %v1376 = vsel %vm1272, %v1368, 0.0
        %1377 = vadd.xlane.f32.xlu0 %v1376
        %v1378 = vpop.xlane.xlu0 %1377
        %v1379 = vsel %vm1272, %v1370, 0.0
        %1380 = vadd.xlane.f32.xlu0 %v1379
        %v1381 = vpop.xlane.xlu0 %1380
        %v1382 = vsel %vm1272, %v1372, 0.0
        %1383 = vadd.xlane.f32.xlu0 %v1382
        %v1384 = vpop.xlane.xlu0 %1383
        %v1385 = vrcp.pop %v1375
        %v1386 = vrcp.pop %v1378
        %v1387 = vrcp.pop %v1381
        %v1388 = vrcp.pop %v1384
        %v1389 = vmul.f32 %v1366, %v1385
        %v1390 = vmul.f32 %v1368, %v1386
        %v1391 = vmul.f32 %v1370, %v1387
        %v1392 = vmul.f32 %v1372, %v1388
        %v1393 = vpack.c.bf16 %v1389, %v1389
        %v1394 = vpack.c.bf16 %v1390, %v1390
        %v1395 = vpack.c.bf16 %v1391, %v1391
        %v1396 = vpack.c.bf16 %v1392, %v1392
        %v1398 = vsel %vm1272, %v1393, 0
        %vm1400 = vcmask 1043456
        %v1402 = vsel %vm1400, %v1268, 0
        %1404 = vmatpush.bf16.msra.mxu0 0
        %1405 = vmatpush.bf16.msra.mxu0 0
        %1406 = vmatpush.bf16.msra.mxu0 0
        %1407 = vmatpush.bf16.msra.mxu0 0
        %1408 = vmatpush.bf16.msra.mxu0 0
        %1409 = vmatpush.bf16.msra.mxu0 0
        %1410 = vmatpush.bf16.msra.mxu0 0
        %1411 = vmatpush.bf16.msra.mxu0 %v1402
        %1412 = vmatmul.bf16.gmra.mxu0 %v1398
        %v1413 = vpop.f32.mrf.mxu0
        %v1414 = vadd.f32 0.0, %v1413
        %v1415 = vpop.f32.mrf.mxu0
        %1416 = vdwg.mxu0
        %v1418 = vsel %vm1272, %v1394, 0
        %v1421 = vsel %vm1400, %v1269, 0
        %1423 = vmatpush.bf16.msra.mxu0 0
        %1424 = vmatpush.bf16.msra.mxu0 0
        %1425 = vmatpush.bf16.msra.mxu0 0
        %1426 = vmatpush.bf16.msra.mxu0 0
        %1427 = vmatpush.bf16.msra.mxu0 0
        %1428 = vmatpush.bf16.msra.mxu0 0
        %1429 = vmatpush.bf16.msra.mxu0 0
        %1430 = vmatpush.bf16.msra.mxu0 %v1421
        %1431 = vmatmul.bf16.gmra.mxu0 %v1418
        %v1432 = vpop.f32.mrf.mxu0
        %v1433 = vadd.f32 0.0, %v1432
        %v1434 = vpop.f32.mrf.mxu0
        %1435 = vdwg.mxu0
        %v1437 = vsel %vm1272, %v1395, 0
        %v1440 = vsel %vm1400, %v1270, 0
        %1442 = vmatpush.bf16.msra.mxu0 0
        %1443 = vmatpush.bf16.msra.mxu0 0
        %1444 = vmatpush.bf16.msra.mxu0 0
        %1445 = vmatpush.bf16.msra.mxu0 0
        %1446 = vmatpush.bf16.msra.mxu0 0
        %1447 = vmatpush.bf16.msra.mxu0 0
        %1448 = vmatpush.bf16.msra.mxu0 0
        %1449 = vmatpush.bf16.msra.mxu0 %v1440
        %1450 = vmatmul.bf16.gmra.mxu0 %v1437
        %v1451 = vpop.f32.mrf.mxu0
        %v1452 = vadd.f32 0.0, %v1451
        %v1453 = vpop.f32.mrf.mxu0
        %1454 = vdwg.mxu0
        %v1456 = vsel %vm1272, %v1396, 0
        %v1459 = vsel %vm1400, %v1271, 0
        %1461 = vmatpush.bf16.msra.mxu0 0
        %1462 = vmatpush.bf16.msra.mxu0 0
        %1463 = vmatpush.bf16.msra.mxu0 0
        %1464 = vmatpush.bf16.msra.mxu0 0
        %1465 = vmatpush.bf16.msra.mxu0 0
        %1466 = vmatpush.bf16.msra.mxu0 0
        %1467 = vmatpush.bf16.msra.mxu0 0
        %1468 = vmatpush.bf16.msra.mxu0 %v1459
        %1469 = vmatmul.bf16.gmra.mxu0 %v1456
        %v1470 = vpop.f32.mrf.mxu0
        %v1471 = vadd.f32 0.0, %v1470
        %v1472 = vpop.f32.mrf.mxu0
        %1473 = vdwg.mxu0
        %v1474 = vrot.slane %v1452, 4
        %v1475 = vsel %vm906, %v1474, %v1414
        %v1476 = vrot.slane %v1414, 4
        %v1477 = vsel %vm906, %v1452, %v1476
        %v1479 = vunpack.c.l.s4 1983009808
        %v1480 = vunpack.c.0.s8 %v1479
        %v1481 = vperm.slane %v1475, %v1480
        %v1483 = vunpack.c.l.s4 1983009808
        %v1484 = vunpack.c.0.s8 %v1483
        %v1485 = vperm.slane %v1477, %v1484
        %v1486 = vrot.slane %v1471, 4
        %v1487 = vsel %vm906, %v1486, %v1433
        %v1488 = vrot.slane %v1433, 4
        %v1489 = vsel %vm906, %v1471, %v1488
        %v1491 = vunpack.c.l.s4 1983009808
        %v1492 = vunpack.c.0.s8 %v1491
        %v1493 = vperm.slane %v1487, %v1492
        %v1495 = vunpack.c.l.s4 1983009808
        %v1496 = vunpack.c.0.s8 %v1495
        %v1497 = vperm.slane %v1489, %v1496
        %v1498 = vrot.slane %v1493, 4
        %v1499 = vsel %vm906, %v1498, %v1481
        %v1500 = vrot.slane %v1481, 4
        %v1501 = vsel %vm906, %v1493, %v1500
        %v1503 = vunpack.c.l.s4 1934713408
        %v1504 = vunpack.c.0.s8 %v1503
        %v1505 = vperm.slane %v1499, %v1504
        %v1507 = vunpack.c.l.s4 1934713408
        %v1508 = vunpack.c.0.s8 %v1507
        %v1509 = vperm.slane %v1501, %v1508
        %v1510 = vrot.slane %v1497, 4
        %v1511 = vsel %vm906, %v1510, %v1485
        %v1512 = vrot.slane %v1485, 4
        %v1513 = vsel %vm906, %v1497, %v1512
        %v1515 = vunpack.c.l.s4 1934713408
        %v1516 = vunpack.c.0.s8 %v1515
        %v1517 = vperm.slane %v1511, %v1516
        %v1519 = vunpack.c.l.s4 1934713408
        %v1520 = vunpack.c.0.s8 %v1519
        %v1521 = vperm.slane %v1513, %v1520
        %v1522 = vrot.slane %v1505, 4
        %v1523 = vsel %vm906, 0.0, %v1522
        %v1524 = vrot.slane %v1509, 4
        %v1525 = vsel %vm906, 0.0, %v1524
        %v1526 = vrot.slane %v1517, 4
        %v1527 = vsel %vm906, 0.0, %v1526
        %v1528 = vrot.slane %v1521, 4
        %v1529 = vsel %vm906, 0.0, %v1528
        %v1530 = vsel %vm906, %v1524, %v1505
        %v1532 = vunpack.c.l.s4 1983009808
        %v1533 = vunpack.c.0.s8 %v1532
        %v1534 = vperm.slane %v1530, %v1533
        %v1535 = vrot.slane %v1525, 4
        %v1536 = vsel %vm906, %v1535, %v1523
        %v1538 = vunpack.c.l.s4 1983009808
        %v1539 = vunpack.c.0.s8 %v1538
        %v1540 = vperm.slane %v1536, %v1539
        %v1541 = vsel %vm906, %v1528, %v1517
        %v1543 = vunpack.c.l.s4 1983009808
        %v1544 = vunpack.c.0.s8 %v1543
        %v1545 = vperm.slane %v1541, %v1544
        %v1546 = vrot.slane %v1529, 4
        %v1547 = vsel %vm906, %v1546, %v1527
        %v1549 = vunpack.c.l.s4 1983009808
        %v1550 = vunpack.c.0.s8 %v1549
        %v1551 = vperm.slane %v1547, %v1550
        %v1552 = vrot.slane %v1540, 4
        %v1553 = vsel %vm906, %v1552, %v1534
        %v1554 = vrot.slane %v1534, 4
        %v1555 = vsel %vm906, %v1540, %v1554
        %v1557 = vunpack.c.l.s4 1934713408
        %v1558 = vunpack.c.0.s8 %v1557
        %v1559 = vperm.slane %v1553, %v1558
        %v1561 = vunpack.c.l.s4 1934713408
        %v1562 = vunpack.c.0.s8 %v1561
        %v1563 = vperm.slane %v1555, %v1562
        %v1564 = vrot.slane %v1551, 4
        %v1565 = vsel %vm906, %v1564, %v1545
        %v1566 = vrot.slane %v1545, 4
        %v1567 = vsel %vm906, %v1551, %v1566
        %v1569 = vunpack.c.l.s4 1934713408
        %v1570 = vunpack.c.0.s8 %v1569
        %v1571 = vperm.slane %v1565, %v1570
        %v1573 = vunpack.c.l.s4 1934713408
        %v1574 = vunpack.c.0.s8 %v1573
        %v1575 = vperm.slane %v1567, %v1574
        %v1576 = vrot.slane %v1571, 4
        %v1577 = vsel %vm906, %v1576, %v1559
        %v1578 = vrot.slane %v1559, 4
        %v1579 = vsel %vm906, %v1571, %v1578
        %v1580 = vrot.slane %v1575, 4
        %v1581 = vsel %vm906, %v1580, %v1563
        %v1582 = vrot.slane %v1563, 4
        %v1583 = vsel %vm906, %v1575, %v1582
        %1585 = vrot.lane.b32.xlu0 %v1579, 8
        %v1586 = vpop.permute.xlu0 %1585
        %1589 = vrot.lane.b32.xlu0 %v1581, 16
        %v1590 = vpop.permute.xlu0 %1589
        %1593 = vrot.lane.b32.xlu0 %v1583, 24
        %v1594 = vpop.permute.xlu0 %1593
        %v1596 = vsel %vm1272, %v1577, %v1586
        %vm1597 = vcmask 130048
        %v1598 = vsel %vm1597, %v1596, %v1590
        %vm1599 = vcmask 195584
        %v1600 = vsel %vm1599, %v1598, %v1594
        %v1601 = vld [vmem:[#allocation7] sm:$0xf]
        %v1602 = vld [vmem:[#allocation7 + $0x4] sm:$0xf]
        %v1603 = vld [vmem:[#allocation7 + $0x8] sm:$0xf]
        %v1604 = vld [vmem:[#allocation7 + $0xc] sm:$0xf]
        %v1605 = vld [vmem:[%s7] sm:$0x1]
        %v1606 = vpack.c.bf16 %v1600, %v1600
        %v1608 = vperm.slane %v1605, 0
        %v1614 = vunpack.c.l.b16 %v1601
        %v1615 = vunpack.c.l.b16 %v1602
        %v1616 = vunpack.c.l.b16 %v1603
        %v1617 = vunpack.c.l.b16 %v1604
        %v1618 = vpack.c.b16 %v1615, %v1614
        %v1619 = vpack.c.b16 %v1617, %v1616
        %v1623 = vsel %vm820, %v1606, 0
        %1625 = vmatpush.bf16.msra.mxu0 0
        %1626 = vmatpush.bf16.msra.mxu0 0
        %1627 = vmatpush.bf16.msra.mxu0 0
        %1628 = vmatpush.bf16.msra.mxu0 0
        %1629 = vmatpush.bf16.msra.mxu0 0
        %1630 = vmatpush.bf16.msra.mxu0 0
        %1631 = vmatpush.bf16.msra.mxu0 %v1619
        %1632 = vmatpush.bf16.msra.mxu0 %v1618
        %1633 = vmatmul.bf16.gmra.mxu0 %v1623
        %v1634 = vpop.f32.mrf.mxu0
        %v1635 = vadd.f32 %v1608, %v1634
        %v1636 = vpop.f32.mrf.mxu0
        %1637 = vdwg.mxu0
        %v1638 = vadd.f32 %v816, %v1635
        %v1639 = vld [vmem:[%s8] sm:$0x1]
        %v1640 = vld [vmem:[%s9] sm:$0x1]
        %v1641 = vsel %vm820, %v1638, 0.0
        %1642 = vadd.xlane.f32.xlu0 %v1641
        %v1643 = vpop.xlane.xlu0 %1642
        %v1644 = vmul.f32 %v1643, %v830
        %v1645 = vsub.f32 %v1638, %v1644
        %v1646 = vmul.f32 %v1645, %v1645
        %v1647 = vsel %vm820, %v1646, 0.0
        %1648 = vadd.xlane.f32.xlu0 %v1647
        %v1649 = vpop.xlane.xlu0 %1648
        %v1650 = vmul.f32 %v1649, %v830
        %v1651 = vadd.f32 %v1650, 1e-12
        %v1652 = vrsqrt.pop %v1651
        %v1653 = vmul.f32 %v1652, %v1651
        %v1654 = vmul.f32 %v1653, %v1652
        %v1655 = vmul.f32 0.5, %v1654
        %v1656 = vsub.f32 1.5, %v1655
        %v1657 = vmul.f32 %v1652, %v1656
        %vm1658 = vweird.f32 %v1651
        %vm1659 = vweird.f32 %v1652
        %vm1660 = vmor %vm1658, %vm1659
        %v1661 = vsel %vm1660, %v1652, %v1657
        %v1662 = vmul.f32 %v1645, %v1661
        %v1664 = vperm.slane %v1639, 0
        %v1666 = vmul.f32 %v1662, %v1664
        %v1668 = vperm.slane %v1640, 0
        %v1670 = vadd.f32 %v1666, %v1668
        %v1671 = vld [vmem:[#allocation8] sm:$0xf]
        %v1672 = vld [vmem:[#allocation8 + $0x4] sm:$0xf]
        %v1673 = vld [vmem:[#allocation8 + $0x8] sm:$0xf]
        %v1674 = vld [vmem:[#allocation8 + $0xc] sm:$0xf]
        %v1675 = vld [vmem:[%s11] sm:$0x1]
        %v1676 = vpack.c.bf16 %v1670, %v1670
        %v1678 = vperm.slane %v1675, 0
        %v1684 = vunpack.c.l.b16 %v1671
        %v1685 = vunpack.c.l.b16 %v1672
        %v1686 = vunpack.c.l.b16 %v1673
        %v1687 = vunpack.c.l.b16 %v1674
        %v1688 = vpack.c.b16 %v1685, %v1684
        %v1689 = vpack.c.b16 %v1687, %v1686
        %v1693 = vsel %vm820, %v1676, 0
        %1695 = vmatpush.bf16.msra.mxu0 0
        %1696 = vmatpush.bf16.msra.mxu0 0
        %1697 = vmatpush.bf16.msra.mxu0 0
        %1698 = vmatpush.bf16.msra.mxu0 0
        %1699 = vmatpush.bf16.msra.mxu0 0
        %1700 = vmatpush.bf16.msra.mxu0 0
        %1701 = vmatpush.bf16.msra.mxu0 %v1689
        %1702 = vmatpush.bf16.msra.mxu0 %v1688
        %1703 = vmatmul.bf16.gmra.mxu0 %v1693
        %v1704 = vpop.f32.mrf.mxu0
        %v1705 = vadd.f32 %v1678, %v1704
        %v1706 = vpop.f32.mrf.mxu0
        %1707 = vdwg.mxu0
        %v1708 = vld [vmem:[%s12] sm:$0xf]
        %v1709 = vld [vmem:[%s12 + $0x4] sm:$0xf]
        %v1710 = vld [vmem:[%s12 + $0x8] sm:$0xf]
        %v1711 = vld [vmem:[%s12 + $0xc] sm:$0xf]
        %v1712 = vld [vmem:[%s12 + $0x10] sm:$0xf]
        %v1713 = vld [vmem:[%s12 + $0x14] sm:$0xf]
        %v1714 = vld [vmem:[%s13] sm:$0x1]
        %v1715 = vpack.c.bf16 %v817, %v817
        %v1717 = vperm.slane %v1714, 0
        %v1725 = vunpack.c.l.b16 %v1708
        %v1726 = vunpack.c.l.b16 %v1709
        %v1727 = vunpack.c.l.b16 %v1710
        %v1728 = vunpack.c.l.b16 %v1711
        %v1729 = vunpack.c.l.b16 %v1712
        %v1730 = vunpack.c.l.b16 %v1713
        %v1731 = vpack.c.b16 %v1726, %v1725
        %v1732 = vpack.c.b16 %v1728, %v1727
        %v1733 = vpack.c.b16 %v1730, %v1729
        %vm1737 = vcmask 392192
        %v1739 = vsel %vm1737, %v1715, 0
        %1741 = vmatpush.bf16.msra.mxu0 0
        %1742 = vmatpush.bf16.msra.mxu0 0
        %1743 = vmatpush.bf16.msra.mxu0 0
        %1744 = vmatpush.bf16.msra.mxu0 0
        %1745 = vmatpush.bf16.msra.mxu0 0
        %1746 = vmatpush.bf16.msra.mxu0 %v1733
        %1747 = vmatpush.bf16.msra.mxu0 %v1732
        %1748 = vmatpush.bf16.msra.mxu0 %v1731
        %1749 = vmatmul.bf16.gmra.mxu0 %v1739
        %v1750 = vpop.f32.mrf.mxu0
        %v1751 = vadd.f32 %v1717, %v1750
        %v1752 = vpop.f32.mrf.mxu0
        %1753 = vdwg.mxu0
        %1755 = vrot.lane.b32.xlu0 %v1705, 120
        %v1756 = vpop.permute.xlu0 %1755
        %1758 = vrot.lane.b32.xlu0 %v1705, 112
        %v1759 = vpop.permute.xlu0 %1758
        %1761 = vrot.lane.b32.xlu0 %v1705, 104
        %v1762 = vpop.permute.xlu0 %1761
        %v1764 = vrot.slane %v1759, 4
        %v1765 = vsel %vm906, %v1764, %v1705
        %v1766 = vrot.slane %v1705, 4
        %v1767 = vsel %vm906, %v1759, %v1766
        %v1769 = vunpack.c.l.s4 1983009808
        %v1770 = vunpack.c.0.s8 %v1769
        %v1771 = vperm.slane %v1765, %v1770
        %v1773 = vunpack.c.l.s4 1983009808
        %v1774 = vunpack.c.0.s8 %v1773
        %v1775 = vperm.slane %v1767, %v1774
        %v1776 = vrot.slane %v1762, 4
        %v1777 = vsel %vm906, %v1776, %v1756
        %v1778 = vrot.slane %v1756, 4
        %v1779 = vsel %vm906, %v1762, %v1778
        %v1781 = vunpack.c.l.s4 1983009808
        %v1782 = vunpack.c.0.s8 %v1781
        %v1783 = vperm.slane %v1777, %v1782
        %v1785 = vunpack.c.l.s4 1983009808
        %v1786 = vunpack.c.0.s8 %v1785
        %v1787 = vperm.slane %v1779, %v1786
        %v1788 = vrot.slane %v1783, 4
        %v1789 = vsel %vm906, %v1788, %v1771
        %v1790 = vrot.slane %v1771, 4
        %v1791 = vsel %vm906, %v1783, %v1790
        %v1793 = vunpack.c.l.s4 1934713408
        %v1794 = vunpack.c.0.s8 %v1793
        %v1795 = vperm.slane %v1789, %v1794
        %v1797 = vunpack.c.l.s4 1934713408
        %v1798 = vunpack.c.0.s8 %v1797
        %v1799 = vperm.slane %v1791, %v1798
        %v1800 = vrot.slane %v1787, 4
        %v1801 = vsel %vm906, %v1800, %v1775
        %v1802 = vrot.slane %v1775, 4
        %v1803 = vsel %vm906, %v1787, %v1802
        %v1805 = vunpack.c.l.s4 1934713408
        %v1806 = vunpack.c.0.s8 %v1805
        %v1807 = vperm.slane %v1801, %v1806
        %v1809 = vunpack.c.l.s4 1934713408
        %v1810 = vunpack.c.0.s8 %v1809
        %v1811 = vperm.slane %v1803, %v1810
        %v1812 = vrot.slane %v1795, 4
        %v1813 = vsel %vm906, 0.0, %v1812
        %v1814 = vrot.slane %v1799, 4
        %v1815 = vsel %vm906, 0.0, %v1814
        %v1816 = vrot.slane %v1807, 4
        %v1817 = vsel %vm906, 0.0, %v1816
        %v1818 = vrot.slane %v1811, 4
        %v1819 = vsel %vm906, 0.0, %v1818
        %v1820 = vsel %vm906, %v1814, %v1795
        %v1822 = vunpack.c.l.s4 1983009808
        %v1823 = vunpack.c.0.s8 %v1822
        %v1824 = vperm.slane %v1820, %v1823
        %v1825 = vrot.slane %v1815, 4
        %v1826 = vsel %vm906, %v1825, %v1813
        %v1828 = vunpack.c.l.s4 1983009808
        %v1829 = vunpack.c.0.s8 %v1828
        %v1830 = vperm.slane %v1826, %v1829
        %v1831 = vsel %vm906, %v1818, %v1807
        %v1833 = vunpack.c.l.s4 1983009808
        %v1834 = vunpack.c.0.s8 %v1833
        %v1835 = vperm.slane %v1831, %v1834
        %v1836 = vrot.slane %v1819, 4
        %v1837 = vsel %vm906, %v1836, %v1817
        %v1839 = vunpack.c.l.s4 1983009808
        %v1840 = vunpack.c.0.s8 %v1839
        %v1841 = vperm.slane %v1837, %v1840
        %v1842 = vrot.slane %v1830, 4
        %v1843 = vsel %vm906, %v1842, %v1824
        %v1844 = vrot.slane %v1824, 4
        %v1845 = vsel %vm906, %v1830, %v1844
        %v1847 = vunpack.c.l.s4 1934713408
        %v1848 = vunpack.c.0.s8 %v1847
        %v1849 = vperm.slane %v1843, %v1848
        %v1851 = vunpack.c.l.s4 1934713408
        %v1852 = vunpack.c.0.s8 %v1851
        %v1853 = vperm.slane %v1845, %v1852
        %v1854 = vrot.slane %v1841, 4
        %v1855 = vsel %vm906, %v1854, %v1835
        %v1856 = vrot.slane %v1835, 4
        %v1857 = vsel %vm906, %v1841, %v1856
        %v1859 = vunpack.c.l.s4 1934713408
        %v1860 = vunpack.c.0.s8 %v1859
        %v1861 = vperm.slane %v1855, %v1860
        %v1863 = vunpack.c.l.s4 1934713408
        %v1864 = vunpack.c.0.s8 %v1863
        %v1865 = vperm.slane %v1857, %v1864
        %v1866 = vrot.slane %v1861, 4
        %v1867 = vsel %vm906, %v1866, %v1849
        %v1868 = vrot.slane %v1849, 4
        %v1869 = vsel %vm906, %v1861, %v1868
        %v1870 = vrot.slane %v1865, 4
        %v1871 = vsel %vm906, %v1870, %v1853
        %v1872 = vrot.slane %v1853, 4
        %v1873 = vsel %vm906, %v1865, %v1872
        %v1874 = vpack.c.bf16 %v1867, %v1867
        %v1875 = vpack.c.bf16 %v1869, %v1869
        %v1876 = vpack.c.bf16 %v1871, %v1871
        %v1877 = vpack.c.bf16 %v1873, %v1873
        %1879 = vrot.lane.b32.xlu0 %v1751, 120
        %v1880 = vpop.permute.xlu0 %1879
        %1882 = vrot.lane.b32.xlu0 %v1751, 112
        %v1883 = vpop.permute.xlu0 %1882
        %1885 = vrot.lane.b32.xlu0 %v1751, 104
        %v1886 = vpop.permute.xlu0 %1885
        %v1888 = vrot.slane %v1883, 4
        %v1889 = vsel %vm906, %v1888, %v1751
        %v1890 = vrot.slane %v1751, 4
        %v1891 = vsel %vm906, %v1883, %v1890
        %v1893 = vunpack.c.l.s4 1983009808
        %v1894 = vunpack.c.0.s8 %v1893
        %v1895 = vperm.slane %v1889, %v1894
        %v1897 = vunpack.c.l.s4 1983009808
        %v1898 = vunpack.c.0.s8 %v1897
        %v1899 = vperm.slane %v1891, %v1898
        %v1900 = vrot.slane %v1886, 4
        %v1901 = vsel %vm906, %v1900, %v1880
        %v1902 = vrot.slane %v1880, 4
        %v1903 = vsel %vm906, %v1886, %v1902
        %v1905 = vunpack.c.l.s4 1983009808
        %v1906 = vunpack.c.0.s8 %v1905
        %v1907 = vperm.slane %v1901, %v1906
        %v1909 = vunpack.c.l.s4 1983009808
        %v1910 = vunpack.c.0.s8 %v1909
        %v1911 = vperm.slane %v1903, %v1910
        %v1912 = vrot.slane %v1907, 4
        %v1913 = vsel %vm906, %v1912, %v1895
        %v1914 = vrot.slane %v1895, 4
        %v1915 = vsel %vm906, %v1907, %v1914
        %v1917 = vunpack.c.l.s4 1934713408
        %v1918 = vunpack.c.0.s8 %v1917
        %v1919 = vperm.slane %v1913, %v1918
        %v1921 = vunpack.c.l.s4 1934713408
        %v1922 = vunpack.c.0.s8 %v1921
        %v1923 = vperm.slane %v1915, %v1922
        %v1924 = vrot.slane %v1911, 4
        %v1925 = vsel %vm906, %v1924, %v1899
        %v1926 = vrot.slane %v1899, 4
        %v1927 = vsel %vm906, %v1911, %v1926
        %v1929 = vunpack.c.l.s4 1934713408
        %v1930 = vunpack.c.0.s8 %v1929
        %v1931 = vperm.slane %v1925, %v1930
        %v1933 = vunpack.c.l.s4 1934713408
        %v1934 = vunpack.c.0.s8 %v1933
        %v1935 = vperm.slane %v1927, %v1934
        %v1936 = vrot.slane %v1919, 4
        %v1937 = vsel %vm906, 0.0, %v1936
        %v1938 = vrot.slane %v1923, 4
        %v1939 = vsel %vm906, 0.0, %v1938
        %v1940 = vrot.slane %v1931, 4
        %v1941 = vsel %vm906, 0.0, %v1940
        %v1942 = vrot.slane %v1935, 4
        %v1943 = vsel %vm906, 0.0, %v1942
        %v1944 = vsel %vm906, %v1938, %v1919
        %v1946 = vunpack.c.l.s4 1983009808
        %v1947 = vunpack.c.0.s8 %v1946
        %v1948 = vperm.slane %v1944, %v1947
        %v1949 = vrot.slane %v1939, 4
        %v1950 = vsel %vm906, %v1949, %v1937
        %v1952 = vunpack.c.l.s4 1983009808
        %v1953 = vunpack.c.0.s8 %v1952
        %v1954 = vperm.slane %v1950, %v1953
        %v1955 = vsel %vm906, %v1942, %v1931
        %v1957 = vunpack.c.l.s4 1983009808
        %v1958 = vunpack.c.0.s8 %v1957
        %v1959 = vperm.slane %v1955, %v1958
        %v1960 = vrot.slane %v1943, 4
        %v1961 = vsel %vm906, %v1960, %v1941
        %v1963 = vunpack.c.l.s4 1983009808
        %v1964 = vunpack.c.0.s8 %v1963
        %v1965 = vperm.slane %v1961, %v1964
        %v1966 = vrot.slane %v1954, 4
        %v1967 = vsel %vm906, %v1966, %v1948
        %v1968 = vrot.slane %v1948, 4
        %v1969 = vsel %vm906, %v1954, %v1968
        %v1971 = vunpack.c.l.s4 1934713408
        %v1972 = vunpack.c.0.s8 %v1971
        %v1973 = vperm.slane %v1967, %v1972
        %v1975 = vunpack.c.l.s4 1934713408
        %v1976 = vunpack.c.0.s8 %v1975
        %v1977 = vperm.slane %v1969, %v1976
        %v1978 = vrot.slane %v1965, 4
        %v1979 = vsel %vm906, %v1978, %v1959
        %v1980 = vrot.slane %v1959, 4
        %v1981 = vsel %vm906, %v1965, %v1980
        %v1983 = vunpack.c.l.s4 1934713408
        %v1984 = vunpack.c.0.s8 %v1983
        %v1985 = vperm.slane %v1979, %v1984
        %v1987 = vunpack.c.l.s4 1934713408
        %v1988 = vunpack.c.0.s8 %v1987
        %v1989 = vperm.slane %v1981, %v1988
        %v1990 = vrot.slane %v1985, 4
        %v1991 = vsel %vm906, %v1990, %v1973
        %v1992 = vrot.slane %v1973, 4
        %v1993 = vsel %vm906, %v1985, %v1992
        %v1994 = vrot.slane %v1989, 4
        %v1995 = vsel %vm906, %v1994, %v1977
        %v1996 = vrot.slane %v1977, 4
        %v1997 = vsel %vm906, %v1989, %v1996
        %v1998 = vpack.c.bf16 %v1991, %v1991
        %v1999 = vpack.c.bf16 %v1993, %v1993
        %v2000 = vpack.c.bf16 %v1995, %v1995
        %v2001 = vpack.c.bf16 %v1997, %v1997
        %2002 = vrot.lane.b32.xlu0 %v1751, 96
        %v2003 = vpop.permute.xlu0 %2002
        %2004 = vrot.lane.b32.xlu0 %v1880, 96
        %v2005 = vpop.permute.xlu0 %2004
        %2006 = vrot.lane.b32.xlu0 %v1883, 96
        %v2007 = vpop.permute.xlu0 %2006
        %2008 = vrot.lane.b32.xlu0 %v1886, 96
        %v2009 = vpop.permute.xlu0 %2008
        %v2014 = vrot.slane %v2007, 4
        %v2015 = vsel %vm906, %v2014, %v2003
        %v2016 = vrot.slane %v2003, 4
        %v2017 = vsel %vm906, %v2007, %v2016
        %v2019 = vunpack.c.l.s4 1983009808
        %v2020 = vunpack.c.0.s8 %v2019
        %v2021 = vperm.slane %v2015, %v2020
        %v2023 = vunpack.c.l.s4 1983009808
        %v2024 = vunpack.c.0.s8 %v2023
        %v2025 = vperm.slane %v2017, %v2024
        %v2026 = vrot.slane %v2009, 4
        %v2027 = vsel %vm906, %v2026, %v2005
        %v2028 = vrot.slane %v2005, 4
        %v2029 = vsel %vm906, %v2009, %v2028
        %v2031 = vunpack.c.l.s4 1983009808
        %v2032 = vunpack.c.0.s8 %v2031
        %v2033 = vperm.slane %v2027, %v2032
        %v2035 = vunpack.c.l.s4 1983009808
        %v2036 = vunpack.c.0.s8 %v2035
        %v2037 = vperm.slane %v2029, %v2036
        %v2038 = vrot.slane %v2033, 4
        %v2039 = vsel %vm906, %v2038, %v2021
        %v2040 = vrot.slane %v2021, 4
        %v2041 = vsel %vm906, %v2033, %v2040
        %v2043 = vunpack.c.l.s4 1934713408
        %v2044 = vunpack.c.0.s8 %v2043
        %v2045 = vperm.slane %v2039, %v2044
        %v2047 = vunpack.c.l.s4 1934713408
        %v2048 = vunpack.c.0.s8 %v2047
        %v2049 = vperm.slane %v2041, %v2048
        %v2050 = vrot.slane %v2037, 4
        %v2051 = vsel %vm906, %v2050, %v2025
        %v2052 = vrot.slane %v2025, 4
        %v2053 = vsel %vm906, %v2037, %v2052
        %v2055 = vunpack.c.l.s4 1934713408
        %v2056 = vunpack.c.0.s8 %v2055
        %v2057 = vperm.slane %v2051, %v2056
        %v2059 = vunpack.c.l.s4 1934713408
        %v2060 = vunpack.c.0.s8 %v2059
        %v2061 = vperm.slane %v2053, %v2060
        %v2062 = vrot.slane %v2045, 4
        %v2063 = vsel %vm906, 0.0, %v2062
        %v2064 = vrot.slane %v2049, 4
        %v2065 = vsel %vm906, 0.0, %v2064
        %v2066 = vrot.slane %v2057, 4
        %v2067 = vsel %vm906, 0.0, %v2066
        %v2068 = vrot.slane %v2061, 4
        %v2069 = vsel %vm906, 0.0, %v2068
        %v2070 = vsel %vm906, %v2064, %v2045
        %v2072 = vunpack.c.l.s4 1983009808
        %v2073 = vunpack.c.0.s8 %v2072
        %v2074 = vperm.slane %v2070, %v2073
        %v2075 = vrot.slane %v2065, 4
        %v2076 = vsel %vm906, %v2075, %v2063
        %v2078 = vunpack.c.l.s4 1983009808
        %v2079 = vunpack.c.0.s8 %v2078
        %v2080 = vperm.slane %v2076, %v2079
        %v2081 = vsel %vm906, %v2068, %v2057
        %v2083 = vunpack.c.l.s4 1983009808
        %v2084 = vunpack.c.0.s8 %v2083
        %v2085 = vperm.slane %v2081, %v2084
        %v2086 = vrot.slane %v2069, 4
        %v2087 = vsel %vm906, %v2086, %v2067
        %v2089 = vunpack.c.l.s4 1983009808
        %v2090 = vunpack.c.0.s8 %v2089
        %v2091 = vperm.slane %v2087, %v2090
        %v2092 = vrot.slane %v2080, 4
        %v2093 = vsel %vm906, %v2092, %v2074
        %v2094 = vrot.slane %v2074, 4
        %v2095 = vsel %vm906, %v2080, %v2094
        %v2097 = vunpack.c.l.s4 1934713408
        %v2098 = vunpack.c.0.s8 %v2097
        %v2099 = vperm.slane %v2093, %v2098
        %v2101 = vunpack.c.l.s4 1934713408
        %v2102 = vunpack.c.0.s8 %v2101
        %v2103 = vperm.slane %v2095, %v2102
        %v2104 = vrot.slane %v2091, 4
        %v2105 = vsel %vm906, %v2104, %v2085
        %v2106 = vrot.slane %v2085, 4
        %v2107 = vsel %vm906, %v2091, %v2106
        %v2109 = vunpack.c.l.s4 1934713408
        %v2110 = vunpack.c.0.s8 %v2109
        %v2111 = vperm.slane %v2105, %v2110
        %v2113 = vunpack.c.l.s4 1934713408
        %v2114 = vunpack.c.0.s8 %v2113
        %v2115 = vperm.slane %v2107, %v2114
        %v2116 = vrot.slane %v2111, 4
        %v2117 = vsel %vm906, %v2116, %v2099
        %v2118 = vrot.slane %v2099, 4
        %v2119 = vsel %vm906, %v2111, %v2118
        %v2120 = vrot.slane %v2115, 4
        %v2121 = vsel %vm906, %v2120, %v2103
        %v2122 = vrot.slane %v2103, 4
        %v2123 = vsel %vm906, %v2115, %v2122
        %v2124 = vpack.c.bf16 %v2117, %v2117
        %v2125 = vpack.c.bf16 %v2119, %v2119
        %v2126 = vpack.c.bf16 %v2121, %v2121
        %v2127 = vpack.c.bf16 %v2123, %v2123
        %v2129 = vsel %vm1272, %v1874, 0
        %v2132 = vsel %vm1272, %v1998, 0
        %2134 = vmatpush.bf16.xpose.msra.mxu0 0
        %2135 = vmatpush.bf16.xpose.msra.mxu0 0
        %2136 = vmatpush.bf16.xpose.msra.mxu0 0
        %2137 = vmatpush.bf16.xpose.msra.mxu0 0
        %2138 = vmatpush.bf16.xpose.msra.mxu0 0
        %2139 = vmatpush.bf16.xpose.msra.mxu0 0
        %2140 = vmatpush.bf16.xpose.msra.mxu0 0
        %2141 = vmatpush.bf16.xpose.msra.mxu0 %v2132
        %2142 = vmatmul.bf16.gmra.mxu0 %v2129
        %v2143 = vpop.f32.mrf.mxu0
        %v2144 = vadd.f32 0.0, %v2143
        %v2145 = vpop.f32.mrf.mxu0
        %2146 = vdwg.mxu0
        %v2148 = vsel %vm1272, %v1875, 0
        %v2151 = vsel %vm1272, %v1999, 0
        %2153 = vmatpush.bf16.xpose.msra.mxu0 0
        %2154 = vmatpush.bf16.xpose.msra.mxu0 0
        %2155 = vmatpush.bf16.xpose.msra.mxu0 0
        %2156 = vmatpush.bf16.xpose.msra.mxu0 0
        %2157 = vmatpush.bf16.xpose.msra.mxu0 0
        %2158 = vmatpush.bf16.xpose.msra.mxu0 0
        %2159 = vmatpush.bf16.xpose.msra.mxu0 0
        %2160 = vmatpush.bf16.xpose.msra.mxu0 %v2151
        %2161 = vmatmul.bf16.gmra.mxu0 %v2148
        %v2162 = vpop.f32.mrf.mxu0
        %v2163 = vadd.f32 0.0, %v2162
        %v2164 = vpop.f32.mrf.mxu0
        %2165 = vdwg.mxu0
        %v2167 = vsel %vm1272, %v1876, 0
        %v2170 = vsel %vm1272, %v2000, 0
        %2172 = vmatpush.bf16.xpose.msra.mxu0 0
        %2173 = vmatpush.bf16.xpose.msra.mxu0 0
        %2174 = vmatpush.bf16.xpose.msra.mxu0 0
        %2175 = vmatpush.bf16.xpose.msra.mxu0 0
        %2176 = vmatpush.bf16.xpose.msra.mxu0 0
        %2177 = vmatpush.bf16.xpose.msra.mxu0 0
        %2178 = vmatpush.bf16.xpose.msra.mxu0 0
        %2179 = vmatpush.bf16.xpose.msra.mxu0 %v2170
        %2180 = vmatmul.bf16.gmra.mxu0 %v2167
        %v2181 = vpop.f32.mrf.mxu0
        %v2182 = vadd.f32 0.0, %v2181
        %v2183 = vpop.f32.mrf.mxu0
        %2184 = vdwg.mxu0
        %v2186 = vsel %vm1272, %v1877, 0
        %v2189 = vsel %vm1272, %v2001, 0
        %2191 = vmatpush.bf16.xpose.msra.mxu0 0
        %2192 = vmatpush.bf16.xpose.msra.mxu0 0
        %2193 = vmatpush.bf16.xpose.msra.mxu0 0
        %2194 = vmatpush.bf16.xpose.msra.mxu0 0
        %2195 = vmatpush.bf16.xpose.msra.mxu0 0
        %2196 = vmatpush.bf16.xpose.msra.mxu0 0
        %2197 = vmatpush.bf16.xpose.msra.mxu0 0
        %2198 = vmatpush.bf16.xpose.msra.mxu0 %v2189
        %2199 = vmatmul.bf16.gmra.mxu0 %v2186
        %v2200 = vpop.f32.mrf.mxu0
        %v2201 = vadd.f32 0.0, %v2200
        %v2202 = vpop.f32.mrf.mxu0
        %2203 = vdwg.mxu0
        %v2204 = vsel %vm1272, %v2144, -inf
        %2205 = vmax.xlane.f32.xlu0 %v2204
        %v2206 = vpop.xlane.xlu0 %2205
        %v2207 = vsel %vm1272, %v2163, -inf
        %2208 = vmax.xlane.f32.xlu0 %v2207
        %v2209 = vpop.xlane.xlu0 %2208
        %v2210 = vsel %vm1272, %v2182, -inf
        %2211 = vmax.xlane.f32.xlu0 %v2210
        %v2212 = vpop.xlane.xlu0 %2211
        %v2213 = vsel %vm1272, %v2201, -inf
        %2214 = vmax.xlane.f32.xlu0 %v2213
        %v2215 = vpop.xlane.xlu0 %2214
        %v2216 = vsub.f32 %v2144, %v2206
        %v2217 = vsub.f32 %v2163, %v2209
        %v2218 = vsub.f32 %v2182, %v2212
        %v2219 = vsub.f32 %v2201, %v2215
        %v2220 = vmul.f32 %v2216, 1.442695
        %v2221 = vpow.pop %v2220
        %v2222 = vmul.f32 %v2217, 1.442695
        %v2223 = vpow.pop %v2222
        %v2224 = vmul.f32 %v2218, 1.442695
        %v2225 = vpow.pop %v2224
        %v2226 = vmul.f32 %v2219, 1.442695
        %v2227 = vpow.pop %v2226
        %v2228 = vsel %vm1272, %v2221, 0.0
        %2229 = vadd.xlane.f32.xlu0 %v2228
        %v2230 = vpop.xlane.xlu0 %2229
        %v2231 = vsel %vm1272, %v2223, 0.0
        %2232 = vadd.xlane.f32.xlu0 %v2231
        %v2233 = vpop.xlane.xlu0 %2232
        %v2234 = vsel %vm1272, %v2225, 0.0
        %2235 = vadd.xlane.f32.xlu0 %v2234
        %v2236 = vpop.xlane.xlu0 %2235
        %v2237 = vsel %vm1272, %v2227, 0.0
        %2238 = vadd.xlane.f32.xlu0 %v2237
        %v2239 = vpop.xlane.xlu0 %2238
        %v2240 = vrcp.pop %v2230
        %v2241 = vrcp.pop %v2233
        %v2242 = vrcp.pop %v2236
        %v2243 = vrcp.pop %v2239
        %v2244 = vmul.f32 %v2221, %v2240
        %v2245 = vmul.f32 %v2223, %v2241
        %v2246 = vmul.f32 %v2225, %v2242
        %v2247 = vmul.f32 %v2227, %v2243
        %v2248 = vpack.c.bf16 %v2244, %v2244
        %v2249 = vpack.c.bf16 %v2245, %v2245
        %v2250 = vpack.c.bf16 %v2246, %v2246
        %v2251 = vpack.c.bf16 %v2247, %v2247
        %v2253 = vsel %vm1272, %v2248, 0
        %v2256 = vsel %vm1400, %v2124, 0
        %2258 = vmatpush.bf16.msra.mxu0 0
        %2259 = vmatpush.bf16.msra.mxu0 0
        %2260 = vmatpush.bf16.msra.mxu0 0
        %2261 = vmatpush.bf16.msra.mxu0 0
        %2262 = vmatpush.bf16.msra.mxu0 0
        %2263 = vmatpush.bf16.msra.mxu0 0
        %2264 = vmatpush.bf16.msra.mxu0 0
        %2265 = vmatpush.bf16.msra.mxu0 %v2256
        %2266 = vmatmul.bf16.gmra.mxu0 %v2253
        %v2267 = vpop.f32.mrf.mxu0
        %v2268 = vadd.f32 0.0, %v2267
        %v2269 = vpop.f32.mrf.mxu0
        %2270 = vdwg.mxu0
        %v2272 = vsel %vm1272, %v2249, 0
        %v2275 = vsel %vm1400, %v2125, 0
        %2277 = vmatpush.bf16.msra.mxu0 0
        %2278 = vmatpush.bf16.msra.mxu0 0
        %2279 = vmatpush.bf16.msra.mxu0 0
        %2280 = vmatpush.bf16.msra.mxu0 0
        %2281 = vmatpush.bf16.msra.mxu0 0
        %2282 = vmatpush.bf16.msra.mxu0 0
        %2283 = vmatpush.bf16.msra.mxu0 0
        %2284 = vmatpush.bf16.msra.mxu0 %v2275
        %2285 = vmatmul.bf16.gmra.mxu0 %v2272
        %v2286 = vpop.f32.mrf.mxu0
        %v2287 = vadd.f32 0.0, %v2286
        %v2288 = vpop.f32.mrf.mxu0
        %2289 = vdwg.mxu0
        %v2291 = vsel %vm1272, %v2250, 0
        %v2294 = vsel %vm1400, %v2126, 0
        %2296 = vmatpush.bf16.msra.mxu0 0
        %2297 = vmatpush.bf16.msra.mxu0 0
        %2298 = vmatpush.bf16.msra.mxu0 0
        %2299 = vmatpush.bf16.msra.mxu0 0
        %2300 = vmatpush.bf16.msra.mxu0 0
        %2301 = vmatpush.bf16.msra.mxu0 0
        %2302 = vmatpush.bf16.msra.mxu0 0
        %2303 = vmatpush.bf16.msra.mxu0 %v2294
        %2304 = vmatmul.bf16.gmra.mxu0 %v2291
        %v2305 = vpop.f32.mrf.mxu0
        %v2306 = vadd.f32 0.0, %v2305
        %v2307 = vpop.f32.mrf.mxu0
        %2308 = vdwg.mxu0
        %v2310 = vsel %vm1272, %v2251, 0
        %v2313 = vsel %vm1400, %v2127, 0
        %2315 = vmatpush.bf16.msra.mxu0 0
        %2316 = vmatpush.bf16.msra.mxu0 0
        %2317 = vmatpush.bf16.msra.mxu0 0
        %2318 = vmatpush.bf16.msra.mxu0 0
        %2319 = vmatpush.bf16.msra.mxu0 0
        %2320 = vmatpush.bf16.msra.mxu0 0
        %2321 = vmatpush.bf16.msra.mxu0 0
        %2322 = vmatpush.bf16.msra.mxu0 %v2313
        %2323 = vmatmul.bf16.gmra.mxu0 %v2310
        %v2324 = vpop.f32.mrf.mxu0
        %v2325 = vadd.f32 0.0, %v2324
        %v2326 = vpop.f32.mrf.mxu0
        %2327 = vdwg.mxu0
        %v2328 = vrot.slane %v2306, 4
        %v2329 = vsel %vm906, %v2328, %v2268
        %v2330 = vrot.slane %v2268, 4
        %v2331 = vsel %vm906, %v2306, %v2330
        %v2333 = vunpack.c.l.s4 1983009808
        %v2334 = vunpack.c.0.s8 %v2333
        %v2335 = vperm.slane %v2329, %v2334
        %v2337 = vunpack.c.l.s4 1983009808
        %v2338 = vunpack.c.0.s8 %v2337
        %v2339 = vperm.slane %v2331, %v2338
        %v2340 = vrot.slane %v2325, 4
        %v2341 = vsel %vm906, %v2340, %v2287
        %v2342 = vrot.slane %v2287, 4
        %v2343 = vsel %vm906, %v2325, %v2342
        %v2345 = vunpack.c.l.s4 1983009808
        %v2346 = vunpack.c.0.s8 %v2345
        %v2347 = vperm.slane %v2341, %v2346
        %v2349 = vunpack.c.l.s4 1983009808
        %v2350 = vunpack.c.0.s8 %v2349
        %v2351 = vperm.slane %v2343, %v2350
        %v2352 = vrot.slane %v2347, 4
        %v2353 = vsel %vm906, %v2352, %v2335
        %v2354 = vrot.slane %v2335, 4
        %v2355 = vsel %vm906, %v2347, %v2354
        %v2357 = vunpack.c.l.s4 1934713408
        %v2358 = vunpack.c.0.s8 %v2357
        %v2359 = vperm.slane %v2353, %v2358
        %v2361 = vunpack.c.l.s4 1934713408
        %v2362 = vunpack.c.0.s8 %v2361
        %v2363 = vperm.slane %v2355, %v2362
        %v2364 = vrot.slane %v2351, 4
        %v2365 = vsel %vm906, %v2364, %v2339
        %v2366 = vrot.slane %v2339, 4
        %v2367 = vsel %vm906, %v2351, %v2366
        %v2369 = vunpack.c.l.s4 1934713408
        %v2370 = vunpack.c.0.s8 %v2369
        %v2371 = vperm.slane %v2365, %v2370
        %v2373 = vunpack.c.l.s4 1934713408
        %v2374 = vunpack.c.0.s8 %v2373
        %v2375 = vperm.slane %v2367, %v2374
        %v2376 = vrot.slane %v2359, 4
        %v2377 = vsel %vm906, 0.0, %v2376
        %v2378 = vrot.slane %v2363, 4
        %v2379 = vsel %vm906, 0.0, %v2378
        %v2380 = vrot.slane %v2371, 4
        %v2381 = vsel %vm906, 0.0, %v2380
        %v2382 = vrot.slane %v2375, 4
        %v2383 = vsel %vm906, 0.0, %v2382
        %v2384 = vsel %vm906, %v2378, %v2359
        %v2386 = vunpack.c.l.s4 1983009808
        %v2387 = vunpack.c.0.s8 %v2386
        %v2388 = vperm.slane %v2384, %v2387
        %v2389 = vrot.slane %v2379, 4
        %v2390 = vsel %vm906, %v2389, %v2377
        %v2392 = vunpack.c.l.s4 1983009808
        %v2393 = vunpack.c.0.s8 %v2392
        %v2394 = vperm.slane %v2390, %v2393
        %v2395 = vsel %vm906, %v2382, %v2371
        %v2397 = vunpack.c.l.s4 1983009808
        %v2398 = vunpack.c.0.s8 %v2397
        %v2399 = vperm.slane %v2395, %v2398
        %v2400 = vrot.slane %v2383, 4
        %v2401 = vsel %vm906, %v2400, %v2381
        %v2403 = vunpack.c.l.s4 1983009808
        %v2404 = vunpack.c.0.s8 %v2403
        %v2405 = vperm.slane %v2401, %v2404
        %v2406 = vrot.slane %v2394, 4
        %v2407 = vsel %vm906, %v2406, %v2388
        %v2408 = vrot.slane %v2388, 4
        %v2409 = vsel %vm906, %v2394, %v2408
        %v2411 = vunpack.c.l.s4 1934713408
        %v2412 = vunpack.c.0.s8 %v2411
        %v2413 = vperm.slane %v2407, %v2412
        %v2415 = vunpack.c.l.s4 1934713408
        %v2416 = vunpack.c.0.s8 %v2415
        %v2417 = vperm.slane %v2409, %v2416
        %v2418 = vrot.slane %v2405, 4
        %v2419 = vsel %vm906, %v2418, %v2399
        %v2420 = vrot.slane %v2399, 4
        %v2421 = vsel %vm906, %v2405, %v2420
        %v2423 = vunpack.c.l.s4 1934713408
        %v2424 = vunpack.c.0.s8 %v2423
        %v2425 = vperm.slane %v2419, %v2424
        %v2427 = vunpack.c.l.s4 1934713408
        %v2428 = vunpack.c.0.s8 %v2427
        %v2429 = vperm.slane %v2421, %v2428
        %v2430 = vrot.slane %v2425, 4
        %v2431 = vsel %vm906, %v2430, %v2413
        %v2432 = vrot.slane %v2413, 4
        %v2433 = vsel %vm906, %v2425, %v2432
        %v2434 = vrot.slane %v2429, 4
        %v2435 = vsel %vm906, %v2434, %v2417
        %v2436 = vrot.slane %v2417, 4
        %v2437 = vsel %vm906, %v2429, %v2436
        %2439 = vrot.lane.b32.xlu0 %v2433, 8
        %v2440 = vpop.permute.xlu0 %2439
        %2443 = vrot.lane.b32.xlu0 %v2435, 16
        %v2444 = vpop.permute.xlu0 %2443
        %2447 = vrot.lane.b32.xlu0 %v2437, 24
        %v2448 = vpop.permute.xlu0 %2447
        %v2450 = vsel %vm1272, %v2431, %v2440
        %v2451 = vsel %vm1597, %v2450, %v2444
        %v2452 = vsel %vm1599, %v2451, %v2448
        %v2453 = vld [vmem:[#allocation10] sm:$0xf]
        %v2454 = vld [vmem:[#allocation10 + $0x4] sm:$0xf]
        %v2455 = vld [vmem:[#allocation10 + $0x8] sm:$0xf]
        %v2456 = vld [vmem:[#allocation10 + $0xc] sm:$0xf]
        %v2457 = vld [vmem:[%s15] sm:$0x1]
        %v2458 = vpack.c.bf16 %v2452, %v2452
        %v2460 = vperm.slane %v2457, 0
        %v2466 = vunpack.c.l.b16 %v2453
        %v2467 = vunpack.c.l.b16 %v2454
        %v2468 = vunpack.c.l.b16 %v2455
        %v2469 = vunpack.c.l.b16 %v2456
        %v2470 = vpack.c.b16 %v2467, %v2466
        %v2471 = vpack.c.b16 %v2469, %v2468
        %v2475 = vsel %vm820, %v2458, 0
        %2477 = vmatpush.bf16.msra.mxu0 0
        %2478 = vmatpush.bf16.msra.mxu0 0
        %2479 = vmatpush.bf16.msra.mxu0 0
        %2480 = vmatpush.bf16.msra.mxu0 0
        %2481 = vmatpush.bf16.msra.mxu0 0
        %2482 = vmatpush.bf16.msra.mxu0 0
        %2483 = vmatpush.bf16.msra.mxu0 %v2471
        %2484 = vmatpush.bf16.msra.mxu0 %v2470
        %2485 = vmatmul.bf16.gmra.mxu0 %v2475
        %v2486 = vpop.f32.mrf.mxu0
        %v2487 = vadd.f32 %v2460, %v2486
        %v2488 = vpop.f32.mrf.mxu0
        %2489 = vdwg.mxu0
        %v2490 = vadd.f32 %v1638, %v2487
        %v2491 = vld [vmem:[%s16] sm:$0x1]
        %v2492 = vld [vmem:[%s17] sm:$0x1]
        %v2493 = vsel %vm820, %v2490, 0.0
        %2494 = vadd.xlane.f32.xlu0 %v2493
        %v2495 = vpop.xlane.xlu0 %2494
        %v2496 = vmul.f32 %v2495, %v830
        %v2497 = vsub.f32 %v2490, %v2496
        %v2498 = vmul.f32 %v2497, %v2497
        %v2499 = vsel %vm820, %v2498, 0.0
        %2500 = vadd.xlane.f32.xlu0 %v2499
        %v2501 = vpop.xlane.xlu0 %2500
        %v2502 = vmul.f32 %v2501, %v830
        %v2503 = vadd.f32 %v2502, 1e-12
        %v2504 = vrsqrt.pop %v2503
        %v2505 = vmul.f32 %v2504, %v2503
        %v2506 = vmul.f32 %v2505, %v2504
        %v2507 = vmul.f32 0.5, %v2506
        %v2508 = vsub.f32 1.5, %v2507
        %v2509 = vmul.f32 %v2504, %v2508
        %vm2510 = vweird.f32 %v2503
        %vm2511 = vweird.f32 %v2504
        %vm2512 = vmor %vm2510, %vm2511
        %v2513 = vsel %vm2512, %v2504, %v2509
        %v2514 = vmul.f32 %v2497, %v2513
        %v2516 = vperm.slane %v2491, 0
        %v2518 = vmul.f32 %v2514, %v2516
        %v2520 = vperm.slane %v2492, 0
        %v2522 = vadd.f32 %v2518, %v2520
        %v2523 = vld [vmem:[#allocation11] sm:$0xf]
        %v2524 = vld [vmem:[#allocation11 + $0x4] sm:$0xf]
        %v2525 = vld [vmem:[#allocation11 + $0x8] sm:$0xf]
        %v2526 = vld [vmem:[#allocation11 + $0xc] sm:$0xf]
        %v2527 = vld [vmem:[#allocation13] sm:$0x1]
        %v2528 = vpack.c.bf16 %v2522, %v2522
        %v2530 = vperm.slane %v2527, 0
        %v2536 = vunpack.c.l.b16 %v2523
        %v2537 = vunpack.c.l.b16 %v2524
        %v2538 = vunpack.c.l.b16 %v2525
        %v2539 = vunpack.c.l.b16 %v2526
        %v2540 = vpack.c.b16 %v2537, %v2536
        %v2541 = vpack.c.b16 %v2539, %v2538
        %v2545 = vsel %vm820, %v2528, 0
        %2547 = vmatpush.bf16.msra.mxu0 0
        %2548 = vmatpush.bf16.msra.mxu0 0
        %2549 = vmatpush.bf16.msra.mxu0 0
        %2550 = vmatpush.bf16.msra.mxu0 0
        %2551 = vmatpush.bf16.msra.mxu0 0
        %2552 = vmatpush.bf16.msra.mxu0 0
        %2553 = vmatpush.bf16.msra.mxu0 %v2541
        %2554 = vmatpush.bf16.msra.mxu0 %v2540
        %2555 = vmatmul.bf16.gmra.mxu0 %v2545
        %v2556 = vpop.f32.mrf.mxu0
        %v2557 = vadd.f32 %v2530, %v2556
        %v2558 = vpop.f32.mrf.mxu0
        %2559 = vdwg.mxu0
        %v2560 = vmul.f32 %v2557, 0.5
        %v2561 = vmul.f32 %v2557, 0.70710677
        %v2562 = vmul.f32 %v2561, %v2561
        %v2563 = vmin.f32 16.0, %v2562
        %v2564 = vmul.f32 %v2563, 2.1237322e-06
        %v2565 = vadd.f32 %v2564, 0.00028619796
        %v2566 = vmul.f32 %v2563, %v2565
        %v2567 = vadd.f32 %v2566, 0.0036580483
        %v2568 = vmul.f32 %v2563, %v2567
        %v2569 = vadd.f32 %v2568, 0.05243302
        %v2570 = vmul.f32 %v2563, %v2569
        %v2571 = vadd.f32 %v2570, 0.18741608
        %v2572 = vmul.f32 %v2563, %v2571
        %v2573 = vadd.f32 %v2572, 1.1283791
        %v2574 = vmul.f32 %v2561, %v2573
        %v2575 = vmul.f32 %v2563, 3.8918573e-05
        %v2576 = vadd.f32 %v2575, 0.001143296
        %v2577 = vmul.f32 %v2563, %v2576
        %v2578 = vadd.f32 %v2577, 0.014752088
        %v2579 = vmul.f32 %v2563, %v2578
        %v2580 = vadd.f32 %v2579, 0.112945676
        %v2581 = vmul.f32 %v2563, %v2580
        %v2582 = vadd.f32 %v2581, 0.4994258
        %v2583 = vmul.f32 %v2563, %v2582
        %v2584 = vadd.f32 %v2583, 1.0
        %v2585 = vrcp.pop %v2584
        %v2586 = vmul.f32 %v2584, %v2585
        %v2587 = vsub.f32 1.0, %v2586
        %v2588 = vmul.f32 %v2585, %v2587
        %v2589 = vadd.f32 %v2585, %v2588
        %vm2590 = vweird.f32 %v2584
        %vm2591 = vweird.f32 %v2585
        %vm2592 = vmor %vm2590, %vm2591
        %v2593 = vsel %vm2592, %v2585, %v2589
        %v2594 = vand.u32 2147483647, %v2584
        %vm2595 = vcmp.eq.f32.partialorder %v2594, 8.507059e+37
        %v2596 = vand.u32 %v2584, 2147483648
        %v2597 = vor.u32 1.1754944e-38, %v2596
        %v2598 = vsel %vm2595, %v2597, %v2593
        %v2599 = vmul.f32 %v2574, %v2598
        %v2600 = vmin.f32 %v2599, 1.0
        %v2601 = vmax.f32 %v2600, -1.0
        %v2602 = vadd.f32 %v2601, 1.0
        %v2603 = vmul.f32 %v2560, %v2602
        %v2604 = vld [vmem:[%s20] sm:$0xf]
        %v2605 = vld [vmem:[%s20 + $0x4] sm:$0xf]
        %v2606 = vld [vmem:[%s20 + $0x8] sm:$0xf]
        %v2607 = vld [vmem:[%s20 + $0xc] sm:$0xf]
        %v2608 = vld [vmem:[%s20 + $0x10] sm:$0xf]
        %v2609 = vld [vmem:[%s20 + $0x14] sm:$0xf]
        %v2610 = vld [vmem:[%s20 + $0x18] sm:$0xf]
        %v2611 = vld [vmem:[%s20 + $0x1c] sm:$0xf]
        %v2612 = vld [vmem:[%s21] sm:$0x1]
        %v2613 = vpack.c.bf16 %v2603, %v2603
        %v2615 = vperm.slane %v2612, 0
        %v2625 = vunpack.c.l.b16 %v2604
        %v2626 = vunpack.c.l.b16 %v2605
        %v2627 = vunpack.c.l.b16 %v2606
        %v2628 = vunpack.c.l.b16 %v2607
        %v2629 = vunpack.c.l.b16 %v2608
        %v2630 = vunpack.c.l.b16 %v2609
        %v2631 = vunpack.c.l.b16 %v2610
        %v2632 = vunpack.c.l.b16 %v2611
        %v2633 = vpack.c.b16 %v2626, %v2625
        %v2634 = vpack.c.b16 %v2628, %v2627
        %v2635 = vpack.c.b16 %v2630, %v2629
        %v2636 = vpack.c.b16 %v2632, %v2631
        %vm2641 = vcmask 523264
        %v2643 = vsel %vm2641, %v2613, 0
        %2645 = vmatpush.bf16.msra.mxu0 0
        %2646 = vmatpush.bf16.msra.mxu0 0
        %2647 = vmatpush.bf16.msra.mxu0 0
        %2648 = vmatpush.bf16.msra.mxu0 0
        %2649 = vmatpush.bf16.msra.mxu0 %v2636
        %2650 = vmatpush.bf16.msra.mxu0 %v2635
        %2651 = vmatpush.bf16.msra.mxu0 %v2634
        %2652 = vmatpush.bf16.msra.mxu0 %v2633
        %2653 = vmatmul.bf16.gmra.mxu0 %v2643
        %v2654 = vpop.f32.mrf.mxu0
        %v2655 = vadd.f32 %v2615, %v2654
        %v2656 = vpop.f32.mrf.mxu0
        %2657 = vdwg.mxu0
        %v2658 = vadd.f32 %v2490, %v2655
        %2659 = vst.msk [vmem:[%s810] sm:$0xff] %vm820, %v2658
        %s2660 = sand.u32 %s522, 1
        %s2661 = scalar_lea.sflag [#allocation4], %s2660
        %s2662 = sand.u32 %s522, 1
        %s2663 = smul.addr %s2662, 8
        %s2664 = scalar_lea.vmem [#allocation14], %s2663
        // Predicated region
        $region137: #{qt_layer_forward.1} parent=107 // pred_check
          %p2665 = pneg %p532
        $region138: #{qt_layer_forward.1} parent=107 // pred_check_branch
          %2667 = sbr.rel (%p2665) target = $region140
        $region139: #{qt_layer_forward.1} parent=107 // pred_region
          %2669 = vsyncadd %s2661, 0
          %s2670 = smul.addr %s42, 8
          %s2671 = scalar_lea.hbm %s22, %s2670
          %s2673 = sshll.u32 %s2664, 4
          %s2674 = int_to_ptr.vmem [resolvable:$true] %s2673
          %s2675 = sshll.u32 %s2671, 4
          %s2676 = int_to_ptr.hbm [resolvable:$true] %s2675
          %2678 = dma.vmem_to_hbm [thread:$0]  %s2674, 128, %s2676, %s2661
        $region140: #{qt_layer_forward.1} parent=107 // pred_fallthru
          _
      $region108: #{qt_layer_forward.1} parent=5 // pred_fallthru
        _
      %p2679 = scmp.le.s32.totalorder 2, %s37
      // Predicated region
      $region141: #{qt_layer_forward.1} parent=5 // pred_check
        %p2680 = pneg %p2679
      $region142: #{qt_layer_forward.1} parent=5 // pred_check_branch
        %2682 = sbr.rel (%p2680) target = $region144
      $region143: #{qt_layer_forward.1} parent=5 // pred_region
        %s2683 = ssub.s32 %s37, 2
        // Predicated region
        $region145: #{qt_layer_forward.1} parent=143 // pred_check
          %p2684 = pneg %p538
        $region146: #{qt_layer_forward.1} parent=143 // pred_check_branch
          %2686 = sbr.rel (%p2684) target = $region148
        $region147: #{qt_layer_forward.1} parent=143 // pred_region
          %s2687 = sand.u32 %s523, 1
          %s2688 = scalar_lea.sflag [#allocation4], %s2687
          %s2689 = sand.u32 %s523, 1
          %s2690 = smul.addr %s2689, 8
          %s2691 = scalar_lea.vmem [#allocation14], %s2690
          %2693 = dma.done %s2688, 128
        $region148: #{qt_layer_forward.1} parent=143 // pred_fallthru
          _
      $region144: #{qt_layer_forward.1} parent=5 // pred_fallthru
        _
    $region6: #{qt_layer_forward.1} parent=1 // loop_footer
      %s41 = sadd.s32 1, %s37
    $region7: #{qt_layer_forward.1} parent=1 // loop_footer_branch
      %36 = sbr.rel target = $region3
    $region8: #{qt_layer_forward.1} parent=1 // loop_exit
      _
    %2694 = vsyncpa [#allocation3], 1
    %s2695 = scalar_lea.sflag [#allocation3], 1
    %2696 = vsyncpa %s2695, 1
    %2697 = vsyncpa [#allocation6], 1
    %2698 = vsyncpa [#allocation9], 1
    %2699 = vsyncpa [#allocation12], 1
    %2700 = vsyncpa [#allocation4], 1
    %s2701 = scalar_lea.sflag [#allocation4], 1
    %2702 = vsyncpa %s2701, 1

</llo_original>
